<compile_context>
chip_gen: v7x
topology: tpu7x:2x2x1
jax: 0.10.0
libtpu: 0.0.40
codegen_flags: <defaults>
</compile_context>

<pallas_src>
import math

import jax
import jax.numpy as jnp
from jax import lax
from jax.experimental import pallas as pl
from jax.experimental.pallas import tpu as pltpu

# ---- small synthetic config (fn = LinearAttention(dim, dim_head, heads)) ----
DIM = 8            # input channels
DIM_HEAD = 16
HEADS = 4
INNER = DIM_HEAD * HEADS            # 64
SCALE = DIM_HEAD ** -0.5
_GELU_C = math.sqrt(2.0 / math.pi)


def _is_pow2(v):
    return (v & (v - 1)) == 0


def _mod(a, m):
    return (a & (m - 1)) if _is_pow2(m) else (a % m)


def _div(a, m):
    return (a >> int(math.log2(m))) if _is_pow2(m) else (a // m)


def _gelu_tanh(x):
    # tanh-form GELU: transcendental goes to the (mostly idle) EUP slot; ~3e-4 abs
    # error vs. torch's exact erf GELU, well inside the test tolerance.
    return 0.5 * x * (1.0 + jnp.tanh(_GELU_C * (x + 0.044715 * (x * x * x))))


# --------------------------- fused Pallas kernel ---------------------------

def _make_residual_linattn_kernel(H, W, L):
    """Kernel over one lane-dense chunk of L = (#images in chunk) * H * W tokens."""
    N = H * W
    assert L % N == 0, "a chunk must contain whole images"
    multi_image = L > N   # more than one image folded into the lane axis

    def kernel(x_ref, wdw_ref, wblk_ref, woutT_ref, bout_ref, o_ref):
        # x_ref    : (C, L)          channel-major tokens (batch folded into lanes)
        # wdw_ref  : (C, 9)          depthwise 3x3 taps, tap t = 3*(di+1) + (dj+1)
        # wblk_ref : (3*INNER, 2*C)  block-diagonal [[wq^T, 0], [0, wkv^T]]
        # woutT_ref: (C, INNER),     bout_ref: (C, 1)
        # o_ref    : (C, L)          Residual output: fn(x) + x
        x = x_ref[...].astype(jnp.float32)
        recip = lambda v: pl.reciprocal(v, approx=True)

        # ---- lane -> (image row, image col) decode for the dwconv boundary masks ----
        lane = lax.broadcasted_iota(jnp.int32, (1, L), 1)
        tok = _mod(lane, N)                       # token index within its image
        col = _mod(tok, W)
        row = _div(tok, W)
        not_top, not_bot = row >= 1, row <= H - 2
        not_left, not_right = col >= 1, col <= W - 2

        # ---- depthwise 3x3 conv (zero padding): 8 XLU rolls + masked VPU FMAs ----
        wdw = wdw_ref[...].astype(jnp.float32)    # (C, 9)
        dw = x * wdw[:, 4:5]                      # center tap: no shift, no mask
        for di in (-1, 0, 1):
            for dj in (-1, 0, 1):
                if di == 0 and dj == 0:
                    continue
                t = 3 * (di + 1) + (dj + 1)
                # shifted[l] = x[l + di*W + dj] (circular; out-of-image lanes masked)
                shifted = pltpu.roll(x, (-(di * W + dj)) % L, axis=1)
                mask = not_top if di == -1 else (not_bot if di == 1 else None)
                if dj == -1:
                    mask = not_left if mask is None else mask & not_left
                elif dj == 1:
                    mask = not_right if mask is None else mask & not_right
                shifted = jnp.where(mask, shifted, 0.0)
                dw = dw + shifted * wdw[:, t:t + 1]

        # ---- to_q / to_kv 1x1 convs: ONE block-diagonal MXU matmul ----
        xdw = jnp.concatenate([x, dw], axis=0)                        # (2C, L)
        qkv = jnp.dot(wblk_ref[...], xdw,
                      preferred_element_type=jnp.float32)             # (3*INNER, L)

        # q: softmax over the per-head feature dim (sublanes) -- purely per-token, so
        # the folded-batch layout needs no special handling here.
        qh = qkv[:INNER, :].reshape(HEADS, DIM_HEAD, L)
        qh = jnp.exp(qh - jnp.max(qh, axis=1, keepdims=True))
        qs = (qh * recip(jnp.sum(qh, axis=1, keepdims=True))) * SCALE

        # k: softmax over the token dim *per image*.  With the batch folded into the
        # lane axis, per-image sums are recovered with a block-diagonal same-image
        # mask (one small MXU matmul).  A chunk-global max is a valid stabilizer: it
        # cancels exactly between numerator and denominator.
        k2 = qkv[INNER:2 * INNER, :]                                  # (INNER, L)
        k2 = jnp.exp(k2 - jnp.max(k2, axis=1, keepdims=True))
        if multi_image:
            ir = lax.broadcasted_iota(jnp.int32, (L, L), 0)
            ic = lax.broadcasted_iota(jnp.int32, (L, L), 1)
            same_f = (_div(ir, N) == _div(ic, N)).astype(jnp.float32)  # (L, L)
            denom = jnp.dot(k2, same_f, preferred_element_type=jnp.float32)
        else:
            denom = jnp.sum(k2, axis=1, keepdims=True)
        kn = (k2 * recip(denom)).reshape(HEADS, DIM_HEAD, L)

        vh = qkv[2 * INNER:, :].reshape(HEADS, DIM_HEAD, L)

        # Linear attention written as a same-image-masked token x token contraction so
        # every matmul stays 128-lane dense (identical math to the per-image context
        # form out = ctx_img(l) @ q, just re-associated).  Fine at these token counts;
        # for production-size N use per-image grid chunks to stay linear in N.
        scores = lax.dot_general(kn, qs, (((1,), (1,)), ((0,), (0,))),
                                 preferred_element_type=jnp.float32)   # (HEADS, L, L)
        if multi_image:
            scores = scores * same_f[None, :, :]
        out = lax.dot_general(vh, scores, (((2,), (1,)), ((0,), (0,))),
                              preferred_element_type=jnp.float32)      # (HEADS, dh, L)

        out = _gelu_tanh(out.reshape(INNER, L))                        # channel = h*dh + e
        y = jnp.dot(woutT_ref[...], out,
                    preferred_element_type=jnp.float32)                # to_out 1x1: (C, L)
        y = y + bout_ref[...] + x                                      # bias + residual
        o_ref[...] = y.astype(o_ref.dtype)

    return kernel


# --------------------------- wrapper ---------------------------

def _num_lane_chunks(B, N):
    # v7x has 2 TensorCores: use 2 "parallel" chunks when each chunk is still a
    # multiple of 128 lanes; otherwise one big step (best on single-TC v5e / v6e,
    # where extra grid steps are pure ~0.35us/step overhead).
    if B % 2 == 0 and ((B // 2) * N) % 128 == 0:
        return 2
    return 1


def pack_params(params):
    """One-time weight packing, hoisted out of the per-call / jit path."""
    C = params["wq"].shape[0]
    wqT = params["wq"].T                                          # (INNER, C)
    wkvT = params["wkv"].T                                        # (2*INNER, C)
    w_blk = jnp.concatenate(
        [jnp.concatenate([wqT, jnp.zeros((INNER, C), wqT.dtype)], axis=1),
         jnp.concatenate([jnp.zeros((2 * INNER, C), wkvT.dtype), wkvT], axis=1)],
        axis=0)                                                   # (3*INNER, 2*C)
    return {
        "w_dw_cm": params["w_dw"].reshape(9, C).T,                # (C, 9)
        "w_blk": w_blk,
        "woutT": params["wout"].T,                                # (C, INNER)
        "bout_cm": params["bout"].reshape(C, 1),                  # (C, 1)
    }


def residual_linear_attention(fmap_nchw, packed):
    B, C, H, W = fmap_nchw.shape
    N = H * W
    # Fold batch into the token/lane axis: channel-major (C, B*N) slab.  Pure layout
    # plumbing in the wrapper that buys lane-dense vregs and unmasked stores in-kernel.
    x_cm = jnp.transpose(fmap_nchw.reshape(B, C, N), (1, 0, 2)).reshape(C, B * N)

    G = _num_lane_chunks(B, N)
    L = (B // G) * N            # lanes per grid step (whole images per chunk)

    out_cm = pl.pallas_call(
        _make_residual_linattn_kernel(H, W, L),
        out_shape=jax.ShapeDtypeStruct((C, B * N), fmap_nchw.dtype),
        grid=(G,),
        in_specs=[
            pl.BlockSpec((C, L), lambda g: (0, g)),
            pl.BlockSpec((C, 9), lambda g: (0, 0)),
            pl.BlockSpec((3 * INNER, 2 * C), lambda g: (0, 0)),
            pl.BlockSpec((C, INNER), lambda g: (0, 0)),
            pl.BlockSpec((C, 1), lambda g: (0, 0)),
        ],
        out_specs=pl.BlockSpec((C, L), lambda g: (0, g)),
        compiler_params=pltpu.CompilerParams(dimension_semantics=("parallel",)),
    )(x_cm, packed["w_dw_cm"], packed["w_blk"], packed["woutT"], packed["bout_cm"])

    return jnp.transpose(out_cm.reshape(C, B, N), (1, 0, 2)).reshape(B, C, H, W)


# --------------------------- pure-JAX reference ---------------------------

def reference_residual_linear_attention(fmap_nchw, params):
    B, C, H, W = fmap_nchw.shape
    hp = lax.Precision.HIGHEST
    x = jnp.transpose(fmap_nchw, (0, 2, 3, 1)).astype(jnp.float32)
    N = H * W
    xf = x.reshape(B, N, C)
    q = jnp.einsum("bnc,cd->bnd", xf, params["wq"], precision=hp)
    xp = jnp.pad(x, ((0, 0), (1, 1), (1, 1), (0, 0)))
    dw = jnp.zeros_like(x)
    for di in range(3):
        for dj in range(3):
            dw = dw + xp[:, di:di + H, dj:dj + W, :] * params["w_dw"][di, dj, :]
    kv = jnp.einsum("bnc,cd->bnd", dw.reshape(B, N, C), params["wkv"], precision=hp)
    k, v = kv[..., :INNER], kv[..., INNER:]
    outs = []
    for h in range(HEADS):
        sl = slice(h * DIM_HEAD, (h + 1) * DIM_HEAD)
        qh = jax.nn.softmax(q[..., sl], axis=-1) * SCALE
        kh = jax.nn.softmax(k[..., sl], axis=1)
        vh = v[..., sl]
        ctx = jnp.einsum("bnd,bne->bde", kh, vh, precision=hp)
        outs.append(jnp.einsum("bnd,bde->bne", qh, ctx, precision=hp))
    out = jnp.concatenate(outs, axis=-1)
    out = jax.nn.gelu(out, approximate=False)     # torch.nn.GELU() default (exact erf)
    y = jnp.einsum("bne,ec->bnc", out, params["wout"], precision=hp) + params["bout"]
    y = jnp.transpose(y.reshape(B, H, W, C), (0, 3, 1, 2))
    return y + fmap_nchw.astype(jnp.float32)      # Residual: fn(x) + x


# --------------------------- main ---------------------------

if __name__ == "__main__":
    key = jax.random.PRNGKey(0)
    kx, k1, k2, k3, k4, k5 = jax.random.split(key, 6)
    B, H, W = 2, 8, 8

    fmap = jax.random.normal(kx, (B, DIM, H, W), jnp.float32)   # NCHW (torch-style)

    # Synthetic parameters of the wrapped fn (conv weights flattened to matmul form):
    #   to_q   : Conv2d(dim, inner, 1, bias=False)      -> wq   (dim, inner)
    #   to_kv  : depthwise Conv2d(dim, dim, 3, groups=dim, bias=False) -> w_dw (3,3,dim)
    #            + Conv2d(dim, 2*inner, 1, bias=False)  -> wkv  (dim, 2*inner)
    #   to_out : Conv2d(inner, dim, 1)                  -> wout (inner, dim), bout (dim,)
    params = {
        "wq":   0.2 * jax.random.normal(k1, (DIM, INNER), jnp.float32),
        "w_dw": 0.2 * jax.random.normal(k2, (3, 3, DIM), jnp.float32),
        "wkv":  0.2 * jax.random.normal(k3, (DIM, 2 * INNER), jnp.float32),
        "wout": 0.2 * jax.random.normal(k4, (INNER, DIM), jnp.float32),
        "bout": 0.2 * jax.random.normal(k5, (DIM,), jnp.float32),
    }

    packed = pack_params(params)            # weight prep runs ONCE, not per forward call

    run = jax.jit(residual_linear_attention)
    out = jax.block_until_ready(run(fmap, packed))

    ref = jax.block_until_ready(reference_residual_linear_attention(fmap, params))
    assert out.shape == (B, DIM, H, W)
    assert bool(jnp.allclose(out, ref, rtol=1e-2, atol=1e-2)), "mismatch vs reference"

    print("KERNEL_OK")
</pallas_src>

<mosaic_0001>
module attributes {stable_mosaic.version = 11 : i64} {
  func.func @kernel(%arg0: i32, %arg1: memref<8x128xf32, #tpu.memory_space<vmem>>, %arg2: memref<8x9xf32, #tpu.memory_space<vmem>>, %arg3: memref<192x16xf32, #tpu.memory_space<vmem>>, %arg4: memref<8x64xf32, #tpu.memory_space<vmem>>, %arg5: memref<8x1xf32, #tpu.memory_space<vmem>>, %arg6: memref<8x128xf32, #tpu.memory_space<vmem>>) attributes {dimension_semantics = [#tpu.dimension_semantics<parallel>], iteration_bounds = array<i64: 1>, scalar_prefetch = 0 : i64, scratch_operands = 0 : i64, tpu.core_type = #tpu.core_type<tc>, window_params = [{transform_indices = @transform_0, window_bounds = array<i64: 8, 128>}, {pipeline_mode = #tpu.pipeline_mode<synchronous>, transform_indices = @transform_1, window_bounds = array<i64: 8, 9>}, {pipeline_mode = #tpu.pipeline_mode<synchronous>, transform_indices = @transform_2, window_bounds = array<i64: 192, 16>}, {pipeline_mode = #tpu.pipeline_mode<synchronous>, transform_indices = @transform_3, window_bounds = array<i64: 8, 64>}, {pipeline_mode = #tpu.pipeline_mode<synchronous>, transform_indices = @transform_4, window_bounds = array<i64: 8, 1>}, {transform_indices = @transform_5, window_bounds = array<i64: 8, 128>}]} {
    %c0 = arith.constant 0 : index
    %c0_0 = arith.constant 0 : index
    %0 = vector.load %arg1[%c0, %c0_0] : memref<8x128xf32, #tpu.memory_space<vmem>>, vector<8x128xf32>
    %1 = tpu.iota {dimensions = array<i32: 1>} : vector<1x128xi32>
    %c63_i32 = arith.constant 63 : i32
    %2 = vector.broadcast %c63_i32 : i32 to vector<1x128xi32>
    %3 = arith.andi %1, %2 : vector<1x128xi32>
    %c7_i32 = arith.constant 7 : i32
    %4 = vector.broadcast %c7_i32 : i32 to vector<1x128xi32>
    %5 = arith.andi %3, %4 : vector<1x128xi32>
    %c3_i32 = arith.constant 3 : i32
    %6 = vector.broadcast %c3_i32 : i32 to vector<1x128xi32>
    %7 = arith.shrsi %3, %6 : vector<1x128xi32>
    %c1_i32 = arith.constant 1 : i32
    %8 = vector.broadcast %c1_i32 : i32 to vector<1x128xi32>
    %9 = arith.cmpi sge, %7, %8 : vector<1x128xi32>
    %c6_i32 = arith.constant 6 : i32
    %10 = vector.broadcast %c6_i32 : i32 to vector<1x128xi32>
    %11 = arith.cmpi sle, %7, %10 : vector<1x128xi32>
    %c1_i32_1 = arith.constant 1 : i32
    %12 = vector.broadcast %c1_i32_1 : i32 to vector<1x128xi32>
    %13 = arith.cmpi sge, %5, %12 : vector<1x128xi32>
    %c6_i32_2 = arith.constant 6 : i32
    %14 = vector.broadcast %c6_i32_2 : i32 to vector<1x128xi32>
    %15 = arith.cmpi sle, %5, %14 : vector<1x128xi32>
    %c0_3 = arith.constant 0 : index
    %c0_4 = arith.constant 0 : index
    %16 = vector.load %arg2[%c0_3, %c0_4] : memref<8x9xf32, #tpu.memory_space<vmem>>, vector<8x9xf32>
    %17 = vector.extract_strided_slice %16 {offsets = [0, 4], sizes = [8, 1], strides = [1, 1]} : vector<8x9xf32> to vector<8x1xf32>
    %18 = vector.broadcast %17 : vector<8x1xf32> to vector<8x128xf32>
    %19 = arith.mulf %0, %18 : vector<8x128xf32>
    %c9_i32 = arith.constant 9 : i32
    %20 = tpu.dynamic_rotate %0 by %c9_i32 dim 1 : vector<8x128xf32>, i32 -> vector<8x128xf32>
    %21 = arith.andi %9, %13 : vector<1x128xi1>
    %cst = arith.constant 0.000000e+00 : f32
    %22 = vector.shape_cast %21 : vector<1x128xi1> to vector<1x128xi1>
    %23 = vector.broadcast %22 : vector<1x128xi1> to vector<8x128xi1>
    %24 = vector.broadcast %cst : f32 to vector<8x128xf32>
    %25 = arith.select %23, %20, %24 : vector<8x128xi1>, vector<8x128xf32>
    %26 = vector.extract_strided_slice %16 {offsets = [0, 0], sizes = [8, 1], strides = [1, 1]} : vector<8x9xf32> to vector<8x1xf32>
    %27 = vector.broadcast %26 : vector<8x1xf32> to vector<8x128xf32>
    %28 = arith.mulf %25, %27 : vector<8x128xf32>
    %29 = arith.addf %19, %28 : vector<8x128xf32>
    %c8_i32 = arith.constant 8 : i32
    %30 = tpu.dynamic_rotate %0 by %c8_i32 dim 1 : vector<8x128xf32>, i32 -> vector<8x128xf32>
    %cst_5 = arith.constant 0.000000e+00 : f32
    %31 = vector.shape_cast %9 : vector<1x128xi1> to vector<1x128xi1>
    %32 = vector.broadcast %31 : vector<1x128xi1> to vector<8x128xi1>
    %33 = vector.broadcast %cst_5 : f32 to vector<8x128xf32>
    %34 = arith.select %32, %30, %33 : vector<8x128xi1>, vector<8x128xf32>
    %35 = vector.extract_strided_slice %16 {offsets = [0, 1], sizes = [8, 1], strides = [1, 1]} : vector<8x9xf32> to vector<8x1xf32>
    %36 = vector.broadcast %35 : vector<8x1xf32> to vector<8x128xf32>
    %37 = arith.mulf %34, %36 : vector<8x128xf32>
    %38 = arith.addf %29, %37 : vector<8x128xf32>
    %c7_i32_6 = arith.constant 7 : i32
    %39 = tpu.dynamic_rotate %0 by %c7_i32_6 dim 1 : vector<8x128xf32>, i32 -> vector<8x128xf32>
    %40 = arith.andi %9, %15 : vector<1x128xi1>
    %cst_7 = arith.constant 0.000000e+00 : f32
    %41 = vector.shape_cast %40 : vector<1x128xi1> to vector<1x128xi1>
    %42 = vector.broadcast %41 : vector<1x128xi1> to vector<8x128xi1>
    %43 = vector.broadcast %cst_7 : f32 to vector<8x128xf32>
    %44 = arith.select %42, %39, %43 : vector<8x128xi1>, vector<8x128xf32>
    %45 = vector.extract_strided_slice %16 {offsets = [0, 2], sizes = [8, 1], strides = [1, 1]} : vector<8x9xf32> to vector<8x1xf32>
    %46 = vector.broadcast %45 : vector<8x1xf32> to vector<8x128xf32>
    %47 = arith.mulf %44, %46 : vector<8x128xf32>
    %48 = arith.addf %38, %47 : vector<8x128xf32>
    %c1_i32_8 = arith.constant 1 : i32
    %49 = tpu.dynamic_rotate %0 by %c1_i32_8 dim 1 : vector<8x128xf32>, i32 -> vector<8x128xf32>
    %cst_9 = arith.constant 0.000000e+00 : f32
    %50 = vector.shape_cast %13 : vector<1x128xi1> to vector<1x128xi1>
    %51 = vector.broadcast %50 : vector<1x128xi1> to vector<8x128xi1>
    %52 = vector.broadcast %cst_9 : f32 to vector<8x128xf32>
    %53 = arith.select %51, %49, %52 : vector<8x128xi1>, vector<8x128xf32>
    %54 = vector.extract_strided_slice %16 {offsets = [0, 3], sizes = [8, 1], strides = [1, 1]} : vector<8x9xf32> to vector<8x1xf32>
    %55 = vector.broadcast %54 : vector<8x1xf32> to vector<8x128xf32>
    %56 = arith.mulf %53, %55 : vector<8x128xf32>
    %57 = arith.addf %48, %56 : vector<8x128xf32>
    %c127_i32 = arith.constant 127 : i32
    %58 = tpu.dynamic_rotate %0 by %c127_i32 dim 1 : vector<8x128xf32>, i32 -> vector<8x128xf32>
    %cst_10 = arith.constant 0.000000e+00 : f32
    %59 = vector.shape_cast %15 : vector<1x128xi1> to vector<1x128xi1>
    %60 = vector.broadcast %59 : vector<1x128xi1> to vector<8x128xi1>
    %61 = vector.broadcast %cst_10 : f32 to vector<8x128xf32>
    %62 = arith.select %60, %58, %61 : vector<8x128xi1>, vector<8x128xf32>
    %63 = vector.extract_strided_slice %16 {offsets = [0, 5], sizes = [8, 1], strides = [1, 1]} : vector<8x9xf32> to vector<8x1xf32>
    %64 = vector.broadcast %63 : vector<8x1xf32> to vector<8x128xf32>
    %65 = arith.mulf %62, %64 : vector<8x128xf32>
    %66 = arith.addf %57, %65 : vector<8x128xf32>
    %c121_i32 = arith.constant 121 : i32
    %67 = tpu.dynamic_rotate %0 by %c121_i32 dim 1 : vector<8x128xf32>, i32 -> vector<8x128xf32>
    %68 = arith.andi %11, %13 : vector<1x128xi1>
    %cst_11 = arith.constant 0.000000e+00 : f32
    %69 = vector.shape_cast %68 : vector<1x128xi1> to vector<1x128xi1>
    %70 = vector.broadcast %69 : vector<1x128xi1> to vector<8x128xi1>
    %71 = vector.broadcast %cst_11 : f32 to vector<8x128xf32>
    %72 = arith.select %70, %67, %71 : vector<8x128xi1>, vector<8x128xf32>
    %73 = vector.extract_strided_slice %16 {offsets = [0, 6], sizes = [8, 1], strides = [1, 1]} : vector<8x9xf32> to vector<8x1xf32>
    %74 = vector.broadcast %73 : vector<8x1xf32> to vector<8x128xf32>
    %75 = arith.mulf %72, %74 : vector<8x128xf32>
    %76 = arith.addf %66, %75 : vector<8x128xf32>
    %c120_i32 = arith.constant 120 : i32
    %77 = tpu.dynamic_rotate %0 by %c120_i32 dim 1 : vector<8x128xf32>, i32 -> vector<8x128xf32>
    %cst_12 = arith.constant 0.000000e+00 : f32
    %78 = vector.shape_cast %11 : vector<1x128xi1> to vector<1x128xi1>
    %79 = vector.broadcast %78 : vector<1x128xi1> to vector<8x128xi1>
    %80 = vector.broadcast %cst_12 : f32 to vector<8x128xf32>
    %81 = arith.select %79, %77, %80 : vector<8x128xi1>, vector<8x128xf32>
    %82 = vector.extract_strided_slice %16 {offsets = [0, 7], sizes = [8, 1], strides = [1, 1]} : vector<8x9xf32> to vector<8x1xf32>
    %83 = vector.broadcast %82 : vector<8x1xf32> to vector<8x128xf32>
    %84 = arith.mulf %81, %83 : vector<8x128xf32>
    %85 = arith.addf %76, %84 : vector<8x128xf32>
    %c119_i32 = arith.constant 119 : i32
    %86 = tpu.dynamic_rotate %0 by %c119_i32 dim 1 : vector<8x128xf32>, i32 -> vector<8x128xf32>
    %87 = arith.andi %11, %15 : vector<1x128xi1>
    %cst_13 = arith.constant 0.000000e+00 : f32
    %88 = vector.shape_cast %87 : vector<1x128xi1> to vector<1x128xi1>
    %89 = vector.broadcast %88 : vector<1x128xi1> to vector<8x128xi1>
    %90 = vector.broadcast %cst_13 : f32 to vector<8x128xf32>
    %91 = arith.select %89, %86, %90 : vector<8x128xi1>, vector<8x128xf32>
    %92 = vector.extract_strided_slice %16 {offsets = [0, 8], sizes = [8, 1], strides = [1, 1]} : vector<8x9xf32> to vector<8x1xf32>
    %93 = vector.broadcast %92 : vector<8x1xf32> to vector<8x128xf32>
    %94 = arith.mulf %91, %93 : vector<8x128xf32>
    %95 = arith.addf %85, %94 : vector<8x128xf32>
    %96 = tpu.concatenate %0, %95 in 0 : vector<8x128xf32>, vector<8x128xf32> -> vector<16x128xf32>
    %c0_14 = arith.constant 0 : index
    %c0_15 = arith.constant 0 : index
    %97 = vector.load %arg3[%c0_14, %c0_15] : memref<192x16xf32, #tpu.memory_space<vmem>>, vector<192x16xf32>
    %cst_16 = arith.constant dense<0.000000e+00> : vector<192x128xf32>
    %98 = tpu.matmul %97, %96, %cst_16 {dimension_numbers = #tpu.dot_dimension_numbers<[1], [0], [0], [1], [0, 0, 1, 1], [], []>} : vector<192x16xf32>, vector<16x128xf32>, vector<192x128xf32> -> vector<192x128xf32>
    %99 = vector.extract_strided_slice %98 {offsets = [0, 0], sizes = [64, 128], strides = [1, 1]} : vector<192x128xf32> to vector<64x128xf32>
    %100 = vector.shape_cast %99 : vector<64x128xf32> to vector<4x16x128xf32>
    %cst_17 = arith.constant dense<0xFF800000> : vector<4x128xf32>
    %101 = vector.multi_reduction <maximumf>, %100, %cst_17 [1] : vector<4x16x128xf32> to vector<4x128xf32>
    %102 = vector.shape_cast %101 : vector<4x128xf32> to vector<4x1x128xf32>
    %103 = vector.broadcast %102 : vector<4x1x128xf32> to vector<4x16x128xf32>
    %104 = arith.subf %100, %103 : vector<4x16x128xf32>
    %105 = math.exp %104 : vector<4x16x128xf32>
    %cst_18 = arith.constant dense<0.000000e+00> : vector<4x128xf32>
    %106 = vector.multi_reduction <add>, %105, %cst_18 [1] : vector<4x16x128xf32> to vector<4x128xf32>
    %107 = vector.shape_cast %106 : vector<4x128xf32> to vector<4x1x128xf32>
    %108 = tpu.reciprocal %107 {approx = true} : vector<4x1x128xf32> -> vector<4x1x128xf32>
    %109 = vector.broadcast %108 : vector<4x1x128xf32> to vector<4x16x128xf32>
    %110 = arith.mulf %105, %109 : vector<4x16x128xf32>
    %cst_19 = arith.constant 2.500000e-01 : f32
    %111 = vector.broadcast %cst_19 : f32 to vector<4x16x128xf32>
    %112 = arith.mulf %110, %111 : vector<4x16x128xf32>
    %113 = vector.extract_strided_slice %98 {offsets = [64, 0], sizes = [64, 128], strides = [1, 1]} : vector<192x128xf32> to vector<64x128xf32>
    %cst_20 = arith.constant dense<0xFF800000> : vector<64xf32>
    %114 = vector.multi_reduction <maximumf>, %113, %cst_20 [1] : vector<64x128xf32> to vector<64xf32>
    %115 = vector.shape_cast %114 : vector<64xf32> to vector<64x1xf32>
    %116 = vector.broadcast %115 : vector<64x1xf32> to vector<64x128xf32>
    %117 = arith.subf %113, %116 : vector<64x128xf32>
    %118 = math.exp %117 : vector<64x128xf32>
    %119 = tpu.iota {dimensions = array<i32: 0>} : vector<128x128xi32>
    %120 = tpu.iota {dimensions = array<i32: 1>} : vector<128x128xi32>
    %c6_i32_21 = arith.constant 6 : i32
    %121 = vector.broadcast %c6_i32_21 : i32 to vector<128x128xi32>
    %122 = arith.shrsi %119, %121 : vector<128x128xi32>
    %c6_i32_22 = arith.constant 6 : i32
    %123 = vector.broadcast %c6_i32_22 : i32 to vector<128x128xi32>
    %124 = arith.shrsi %120, %123 : vector<128x128xi32>
    %125 = arith.cmpi eq, %122, %124 : vector<128x128xi32>
    %126 = arith.extui %125 : vector<128x128xi1> to vector<128x128xi32>
    %127 = arith.sitofp %126 : vector<128x128xi32> to vector<128x128xf32>
    %cst_23 = arith.constant dense<0.000000e+00> : vector<64x128xf32>
    %128 = tpu.matmul %118, %127, %cst_23 {dimension_numbers = #tpu.dot_dimension_numbers<[1], [0], [0], [1], [0, 0, 1, 1], [], []>} : vector<64x128xf32>, vector<128x128xf32>, vector<64x128xf32> -> vector<64x128xf32>
    %129 = tpu.reciprocal %128 {approx = true} : vector<64x128xf32> -> vector<64x128xf32>
    %130 = arith.mulf %118, %129 : vector<64x128xf32>
    %131 = vector.shape_cast %130 : vector<64x128xf32> to vector<4x16x128xf32>
    %132 = vector.extract_strided_slice %98 {offsets = [128, 0], sizes = [64, 128], strides = [1, 1]} : vector<192x128xf32> to vector<64x128xf32>
    %133 = vector.shape_cast %132 : vector<64x128xf32> to vector<4x16x128xf32>
    %cst_24 = arith.constant dense<0.000000e+00> : vector<4x128x128xf32>
    %134 = tpu.matmul %131, %112, %cst_24 {dimension_numbers = #tpu.dot_dimension_numbers<[1], [1], [2], [2], [0, 0, 0, 2, 1, 2], [0], [0]>} : vector<4x16x128xf32>, vector<4x16x128xf32>, vector<4x128x128xf32> -> vector<4x128x128xf32>
    %135 = vector.shape_cast %127 : vector<128x128xf32> to vector<1x128x128xf32>
    %136 = vector.broadcast %135 : vector<1x128x128xf32> to vector<4x128x128xf32>
    %137 = arith.mulf %134, %136 : vector<4x128x128xf32>
    %cst_25 = arith.constant dense<0.000000e+00> : vector<4x16x128xf32>
    %138 = tpu.matmul %133, %137, %cst_25 {dimension_numbers = #tpu.dot_dimension_numbers<[2], [1], [1], [2], [0, 0, 0, 1, 1, 2], [0], [0]>} : vector<4x16x128xf32>, vector<4x128x128xf32>, vector<4x16x128xf32> -> vector<4x16x128xf32>
    %139 = vector.shape_cast %138 : vector<4x16x128xf32> to vector<64x128xf32>
    %cst_26 = arith.constant 5.000000e-01 : f32
    %140 = vector.broadcast %cst_26 : f32 to vector<64x128xf32>
    %141 = arith.mulf %140, %139 : vector<64x128xf32>
    %142 = arith.mulf %139, %139 : vector<64x128xf32>
    %143 = arith.mulf %142, %139 : vector<64x128xf32>
    %cst_27 = arith.constant 4.471500e-02 : f32
    %144 = vector.broadcast %cst_27 : f32 to vector<64x128xf32>
    %145 = arith.mulf %144, %143 : vector<64x128xf32>
    %146 = arith.addf %139, %145 : vector<64x128xf32>
    %cst_28 = arith.constant 0.797884583 : f32
    %147 = vector.broadcast %cst_28 : f32 to vector<64x128xf32>
    %148 = arith.mulf %147, %146 : vector<64x128xf32>
    %149 = math.tanh %148 : vector<64x128xf32>
    %cst_29 = arith.constant 1.000000e+00 : f32
    %150 = vector.broadcast %cst_29 : f32 to vector<64x128xf32>
    %151 = arith.addf %150, %149 : vector<64x128xf32>
    %152 = arith.mulf %141, %151 : vector<64x128xf32>
    %c0_30 = arith.constant 0 : index
    %c0_31 = arith.constant 0 : index
    %153 = vector.load %arg4[%c0_30, %c0_31] : memref<8x64xf32, #tpu.memory_space<vmem>>, vector<8x64xf32>
    %cst_32 = arith.constant dense<0.000000e+00> : vector<8x128xf32>
    %154 = tpu.matmul %153, %152, %cst_32 {dimension_numbers = #tpu.dot_dimension_numbers<[1], [0], [0], [1], [0, 0, 1, 1], [], []>} : vector<8x64xf32>, vector<64x128xf32>, vector<8x128xf32> -> vector<8x128xf32>
    %c0_33 = arith.constant 0 : index
    %c0_34 = arith.constant 0 : index
    %155 = vector.load %arg5[%c0_33, %c0_34] : memref<8x1xf32, #tpu.memory_space<vmem>>, vector<8x1xf32>
    %156 = vector.broadcast %155 : vector<8x1xf32> to vector<8x128xf32>
    %157 = arith.addf %154, %156 : vector<8x128xf32>
    %158 = arith.addf %157, %0 : vector<8x128xf32>
    %c0_35 = arith.constant 0 : index
    %c0_36 = arith.constant 0 : index
    %159 = vector.load %arg6[%c0_35, %c0_36] : memref<8x128xf32, #tpu.memory_space<vmem>>, vector<8x128xf32>
    tpu.vector_store %arg6[%c0_35, %c0_36], %158 {strides = array<i32>} : memref<8x128xf32, #tpu.memory_space<vmem>>, vector<8x128xf32>,
    return
  }
  func.func @transform_0(%arg0: i32) -> (i32, i32) {
    %c0_i32 = arith.constant 0 : i32
    %c0_i32_0 = arith.constant 0 : i32
    return %c0_i32, %arg0 : i32, i32
  }
  func.func @transform_1(%arg0: i32) -> (i32, i32) {
    %c0_i32 = arith.constant 0 : i32
    %c0_i32_0 = arith.constant 0 : i32
    %c0_i32_1 = arith.constant 0 : i32
    return %c0_i32, %c0_i32_0 : i32, i32
  }
  func.func @transform_2(%arg0: i32) -> (i32, i32) {
    %c0_i32 = arith.constant 0 : i32
    %c0_i32_0 = arith.constant 0 : i32
    %c0_i32_1 = arith.constant 0 : i32
    return %c0_i32, %c0_i32_0 : i32, i32
  }
  func.func @transform_3(%arg0: i32) -> (i32, i32) {
    %c0_i32 = arith.constant 0 : i32
    %c0_i32_0 = arith.constant 0 : i32
    %c0_i32_1 = arith.constant 0 : i32
    return %c0_i32, %c0_i32_0 : i32, i32
  }
  func.func @transform_4(%arg0: i32) -> (i32, i32) {
    %c0_i32 = arith.constant 0 : i32
    %c0_i32_0 = arith.constant 0 : i32
    %c0_i32_1 = arith.constant 0 : i32
    return %c0_i32, %c0_i32_0 : i32, i32
  }
  func.func @transform_5(%arg0: i32) -> (i32, i32) {
    %c0_i32 = arith.constant 0 : i32
    %c0_i32_0 = arith.constant 0 : i32
    return %c0_i32, %arg0 : i32, i32
  }
}

</mosaic_0001>

<llo_original>
// kernel: residual_linear_attention.1
$region0: #{residual_linear_attention.1}
  #allocation0 [shape = 'u32[]', space=smem, size = 0x4, offset = 0x4, fixed_abs, tag = 'smem constant byte address 0x4 - core index']
  #allocation1 [shape = 'u32[144,128]{1,0:T(1,128)}', space=vmem, size = 0x12000, scoped, tag = 'internal scratch']
  %s0 = inlined_call_operand.vmem [shape: f32[8,128], index: 0, kind: input, shape index: {}]
  %s1 = inlined_call_operand.vmem [shape: f32[8,9], index: 1, kind: input, shape index: {}]
  %s2 = inlined_call_operand.vmem [shape: f32[192,16], index: 2, kind: input, shape index: {}]
  %s3 = inlined_call_operand.vmem [shape: f32[8,64], index: 3, kind: input, shape index: {}]
  %s4 = inlined_call_operand.vmem [shape: f32[8,1], index: 4, kind: input, shape index: {}]
  %s5 = inlined_call_operand.vmem [shape: f32[8,128], index: 5, kind: output, shape index: {}]
  %s6 = sld [smem:[#allocation0]]
  $region30: #{residual_linear_attention.1} parent=0
    _
  %s8 = ssub.s32 1, %s6
  %s9 = scalar_select 0, %s8, %s6
  // Predicated region
  $region2: #{residual_linear_attention.1} parent=0 // pred_check
    _
  $region3: #{residual_linear_attention.1} parent=0 // pred_check_branch
    %11 = sbr.rel (0) target = $region5
  $region4: #{residual_linear_attention.1} parent=0 // pred_region
    _
  $region5: #{residual_linear_attention.1} parent=0 // pred_fallthru
    _
  // Predicated region
  $region6: #{residual_linear_attention.1} parent=0 // pred_check
    _
  $region7: #{residual_linear_attention.1} parent=0 // pred_check_branch
    %13 = sbr.rel (0) target = $region9
  $region8: #{residual_linear_attention.1} parent=0 // pred_region
    _
  $region9: #{residual_linear_attention.1} parent=0 // pred_fallthru
    _
  // Predicated region
  $region10: #{residual_linear_attention.1} parent=0 // pred_check
    _
  $region11: #{residual_linear_attention.1} parent=0 // pred_check_branch
    %15 = sbr.rel (0) target = $region13
  $region12: #{residual_linear_attention.1} parent=0 // pred_region
    _
  $region13: #{residual_linear_attention.1} parent=0 // pred_fallthru
    _
  // Predicated region
  $region14: #{residual_linear_attention.1} parent=0 // pred_check
    _
  $region15: #{residual_linear_attention.1} parent=0 // pred_check_branch
    %17 = sbr.rel (0) target = $region17
  $region16: #{residual_linear_attention.1} parent=0 // pred_region
    _
  $region17: #{residual_linear_attention.1} parent=0 // pred_fallthru
    _
  // Predicated region
  $region18: #{residual_linear_attention.1} parent=0 // pred_check
    _
  $region19: #{residual_linear_attention.1} parent=0 // pred_check_branch
    %19 = sbr.rel (0) target = $region21
  $region20: #{residual_linear_attention.1} parent=0 // pred_region
    _
  $region21: #{residual_linear_attention.1} parent=0 // pred_fallthru
    _
  %v20 = vld [vmem:[%s0] sm:$0xff]
  %v21 = vlaneseq
  %v22 = vand.u32 %v21, 127
  %v23 = vand.u32 %v22, 63
  %v24 = vand.u32 %v23, 7
  %v25 = vshra.s32 %v23, 3
  %vm26 = vcmp.ge.s32.totalorder %v25, 1
  %vm27 = vcmp.le.s32.totalorder %v25, 6
  %vm28 = vcmp.ge.s32.totalorder %v24, 1
  %vm29 = vcmp.le.s32.totalorder %v24, 6
  %v30 = vld [vmem:[%s1] sm:$0xff]
  %32 = vset.pattern.permute.xlu0 4
  %33 = vperm.xlu0 %32, %v30
  %v34 = vpop.permute.xlu0 %33
  %v36 = vmul.f32 %v20, %v34
  %37 = vrot.lane.b32.xlu0 %v20, 9
  %v38 = vpop.permute.xlu0 %37
  %vm39 = vmand %vm26, %vm28
  %v40 = vsel %vm39, 1, 0
  %vm41 = vcmp.eq.s32.totalorder %v40, 1
  %v42 = vsel %vm41, %v38, 0.0
  %43 = vset.pattern.permute.xlu0 0
  %44 = vperm.xlu0 %43, %v30
  %v45 = vpop.permute.xlu0 %44
  %v47 = vmul.f32 %v42, %v45
  %v48 = vadd.f32 %v36, %v47
  %49 = vrot.lane.b32.xlu0 %v20, 8
  %v50 = vpop.permute.xlu0 %49
  %v51 = vsel %vm26, 1, 0
  %vm52 = vcmp.eq.s32.totalorder %v51, 1
  %v53 = vsel %vm52, %v50, 0.0
  %54 = vset.pattern.permute.xlu0 1
  %55 = vperm.xlu0 %54, %v30
  %v56 = vpop.permute.xlu0 %55
  %v58 = vmul.f32 %v53, %v56
  %v59 = vadd.f32 %v48, %v58
  %60 = vrot.lane.b32.xlu0 %v20, 7
  %v61 = vpop.permute.xlu0 %60
  %vm62 = vmand %vm26, %vm29
  %v63 = vsel %vm62, 1, 0
  %vm64 = vcmp.eq.s32.totalorder %v63, 1
  %v65 = vsel %vm64, %v61, 0.0
  %66 = vset.pattern.permute.xlu0 2
  %67 = vperm.xlu0 %66, %v30
  %v68 = vpop.permute.xlu0 %67
  %v70 = vmul.f32 %v65, %v68
  %v71 = vadd.f32 %v59, %v70
  %72 = vrot.lane.b32.xlu0 %v20, 1
  %v73 = vpop.permute.xlu0 %72
  %v74 = vsel %vm28, 1, 0
  %vm75 = vcmp.eq.s32.totalorder %v74, 1
  %v76 = vsel %vm75, %v73, 0.0
  %77 = vset.pattern.permute.xlu0 3
  %78 = vperm.xlu0 %77, %v30
  %v79 = vpop.permute.xlu0 %78
  %v81 = vmul.f32 %v76, %v79
  %v82 = vadd.f32 %v71, %v81
  %83 = vrot.lane.b32.xlu0 %v20, 127
  %v84 = vpop.permute.xlu0 %83
  %v85 = vsel %vm29, 1, 0
  %vm86 = vcmp.eq.s32.totalorder %v85, 1
  %v87 = vsel %vm86, %v84, 0.0
  %88 = vset.pattern.permute.xlu0 5
  %89 = vperm.xlu0 %88, %v30
  %v90 = vpop.permute.xlu0 %89
  %v92 = vmul.f32 %v87, %v90
  %v93 = vadd.f32 %v82, %v92
  %94 = vrot.lane.b32.xlu0 %v20, 121
  %v95 = vpop.permute.xlu0 %94
  %vm96 = vmand %vm27, %vm28
  %v97 = vsel %vm96, 1, 0
  %vm98 = vcmp.eq.s32.totalorder %v97, 1
  %v99 = vsel %vm98, %v95, 0.0
  %100 = vset.pattern.permute.xlu0 6
  %101 = vperm.xlu0 %100, %v30
  %v102 = vpop.permute.xlu0 %101
  %v104 = vmul.f32 %v99, %v102
  %v105 = vadd.f32 %v93, %v104
  %106 = vrot.lane.b32.xlu0 %v20, 120
  %v107 = vpop.permute.xlu0 %106
  %v108 = vsel %vm27, 1, 0
  %vm109 = vcmp.eq.s32.totalorder %v108, 1
  %v110 = vsel %vm109, %v107, 0.0
  %111 = vset.pattern.permute.xlu0 7
  %112 = vperm.xlu0 %111, %v30
  %v113 = vpop.permute.xlu0 %112
  %v115 = vmul.f32 %v110, %v113
  %v116 = vadd.f32 %v105, %v115
  %117 = vrot.lane.b32.xlu0 %v20, 119
  %v118 = vpop.permute.xlu0 %117
  %vm119 = vmand %vm27, %vm29
  %v120 = vsel %vm119, 1, 0
  %vm121 = vcmp.eq.s32.totalorder %v120, 1
  %v122 = vsel %vm121, %v118, 0.0
  %123 = vset.pattern.permute.xlu0 8
  %124 = vperm.xlu0 %123, %v30
  %v125 = vpop.permute.xlu0 %124
  %v127 = vmul.f32 %v122, %v125
  %v128 = vadd.f32 %v116, %v127
  %v129 = vld [vmem:[%s2] sm:$0xff]
  %v130 = vld [vmem:[%s2 + $0x8] sm:$0xff]
  %v131 = vld [vmem:[%s2 + $0x10] sm:$0xff]
  %v132 = vld [vmem:[%s2 + $0x18] sm:$0xff]
  %v133 = vld [vmem:[%s2 + $0x20] sm:$0xff]
  %v134 = vld [vmem:[%s2 + $0x28] sm:$0xff]
  %v135 = vld [vmem:[%s2 + $0x30] sm:$0xff]
  %v136 = vld [vmem:[%s2 + $0x38] sm:$0xff]
  %v137 = vld [vmem:[%s2 + $0x40] sm:$0xff]
  %v138 = vld [vmem:[%s2 + $0x48] sm:$0xff]
  %v139 = vld [vmem:[%s2 + $0x50] sm:$0xff]
  %v140 = vld [vmem:[%s2 + $0x58] sm:$0xff]
  %v141 = vld [vmem:[%s2 + $0x60] sm:$0xff]
  %v142 = vld [vmem:[%s2 + $0x68] sm:$0xff]
  %v143 = vld [vmem:[%s2 + $0x70] sm:$0xff]
  %v144 = vld [vmem:[%s2 + $0x78] sm:$0xff]
  %v145 = vld [vmem:[%s2 + $0x80] sm:$0xff]
  %v146 = vld [vmem:[%s2 + $0x88] sm:$0xff]
  %v147 = vld [vmem:[%s2 + $0x90] sm:$0xff]
  %v148 = vld [vmem:[%s2 + $0x98] sm:$0xff]
  %v149 = vld [vmem:[%s2 + $0xa0] sm:$0xff]
  %v150 = vld [vmem:[%s2 + $0xa8] sm:$0xff]
  %v151 = vld [vmem:[%s2 + $0xb0] sm:$0xff]
  %v152 = vld [vmem:[%s2 + $0xb8] sm:$0xff]
  %vm153 = vcmask 130048
  %v155 = vsel %vm153, %v129, 0
  %v158 = vsel %vm153, %v130, 0
  %v161 = vsel %vm153, %v131, 0
  %v164 = vsel %vm153, %v132, 0
  %v167 = vsel %vm153, %v133, 0
  %v170 = vsel %vm153, %v134, 0
  %v173 = vsel %vm153, %v135, 0
  %v176 = vsel %vm153, %v136, 0
  %v179 = vsel %vm153, %v137, 0
  %v182 = vsel %vm153, %v138, 0
  %v185 = vsel %vm153, %v139, 0
  %v188 = vsel %vm153, %v140, 0
  %v191 = vsel %vm153, %v141, 0
  %v194 = vsel %vm153, %v142, 0
  %v197 = vsel %vm153, %v143, 0
  %v200 = vsel %vm153, %v144, 0
  %v203 = vsel %vm153, %v145, 0
  %v206 = vsel %vm153, %v146, 0
  %v209 = vsel %vm153, %v147, 0
  %v212 = vsel %vm153, %v148, 0
  %v215 = vsel %vm153, %v149, 0
  %v218 = vsel %vm153, %v150, 0
  %v221 = vsel %vm153, %v151, 0
  %v224 = vsel %vm153, %v152, 0
  %226 = vmatprep.subr.mxu0 0.0
  %227 = vmatpush1.msra.mxu0 %v20
  %228 = vmatprep.subr.mxu0 0.0
  %229 = vmatpush1.msra.mxu0 %v128
  %230 = vmatprep.subr.mxu0 0.0
  %231 = vmatpush1.msra.mxu0 0.0
  %232 = vmatprep.subr.mxu0 0.0
  %233 = vmatpush1.msra.mxu0 0.0
  %234 = vmatprep.subr.mxu0 0.0
  %235 = vmatpush1.msra.mxu0 0.0
  %236 = vmatprep.subr.mxu0 0.0
  %237 = vmatpush1.msra.mxu0 0.0
  %238 = vmatprep.subr.mxu0 0.0
  %239 = vmatpush1.msra.mxu0 0.0
  %240 = vmatprep.subr.mxu0 0.0
  %241 = vmatpush1.msra.mxu0 0.0
  %242 = vmatprep.subr.mxu0 0.0
  %243 = vmatpush1.msra.mxu0 0.0
  %244 = vmatprep.subr.mxu0 0.0
  %245 = vmatpush1.msra.mxu0 0.0
  %246 = vmatprep.subr.mxu0 0.0
  %247 = vmatpush1.msra.mxu0 0.0
  %248 = vmatprep.subr.mxu0 0.0
  %249 = vmatpush1.msra.mxu0 0.0
  %250 = vmatprep.subr.mxu0 0.0
  %251 = vmatpush1.msra.mxu0 0.0
  %252 = vmatprep.subr.mxu0 0.0
  %253 = vmatpush1.msra.mxu0 0.0
  %254 = vmatprep.subr.mxu0 0.0
  %255 = vmatpush1.msra.mxu0 0.0
  %256 = vmatprep.subr.mxu0 0.0
  %257 = vmatpush1.msra.mxu0 0.0
  %258 = vmatprep.subr.mxu0 0.0
  %259 = vmatpush1.msra.mxu0 0.0
  %260 = vmatprep.subr.mxu0 0.0
  %261 = vmatpush1.msra.mxu0 0.0
  %262 = vmatprep.subr.mxu0 0.0
  %263 = vmatpush1.msra.mxu0 0.0
  %264 = vmatprep.subr.mxu0 0.0
  %265 = vmatpush1.msra.mxu0 0.0
  %266 = vmatprep.subr.mxu0 0.0
  %267 = vmatpush1.msra.mxu0 0.0
  %268 = vmatprep.subr.mxu0 0.0
  %269 = vmatpush1.msra.mxu0 0.0
  %270 = vmatprep.subr.mxu0 0.0
  %271 = vmatpush1.msra.mxu0 0.0
  %272 = vmatprep.subr.mxu0 0.0
  %273 = vmatpush1.msra.mxu0 0.0
  %274 = vmatprep.subr.mxu0 0.0
  %275 = vmatpush1.msra.mxu0 0.0
  %276 = vmatprep.subr.mxu0 0.0
  %277 = vmatpush1.msra.mxu0 0.0
  %278 = vmatprep.subr.mxu0 0.0
  %279 = vmatpush1.msra.mxu0 0.0
  %280 = vmatprep.subr.mxu0 0.0
  %281 = vmatpush1.msra.mxu0 0.0
  %282 = vmatprep.subr.mxu0 0.0
  %283 = vmatpush1.msra.mxu0 0.0
  %284 = vmatprep.subr.mxu0 0.0
  %285 = vmatpush1.msra.mxu0 0.0
  %286 = vmatprep.subr.mxu0 0.0
  %287 = vmatpush1.msra.mxu0 0.0
  %288 = vmatprep.subr.mxu0 0.0
  %289 = vmatpush1.msra.mxu0 0.0
  %290 = vmatprep.mubr.f32.mxu0 0.0
  %291 = vmatmul.mubr.f32.gmra.mrb[0].mxu0 %v155
  %v292 = vpop.f32.mrb[0].mxu0
  %v293 = vadd.f32 0.0, %v292
  %v294 = vpop.f32.mrb[0].mxu0
  %295 = vmatprep.mubr.f32.mxu0 0.0
  %296 = vmatmul.mubr.f32.gmra.mrb[0].mxu0 %v158
  %v297 = vpop.f32.mrb[0].mxu0
  %v298 = vadd.f32 0.0, %v297
  %v299 = vpop.f32.mrb[0].mxu0
  %300 = vmatprep.mubr.f32.mxu0 0.0
  %301 = vmatmul.mubr.f32.gmra.mrb[0].mxu0 %v161
  %v302 = vpop.f32.mrb[0].mxu0
  %v303 = vadd.f32 0.0, %v302
  %v304 = vpop.f32.mrb[0].mxu0
  %305 = vmatprep.mubr.f32.mxu0 0.0
  %306 = vmatmul.mubr.f32.gmra.mrb[0].mxu0 %v164
  %v307 = vpop.f32.mrb[0].mxu0
  %v308 = vadd.f32 0.0, %v307
  %v309 = vpop.f32.mrb[0].mxu0
  %310 = vmatprep.mubr.f32.mxu0 0.0
  %311 = vmatmul.mubr.f32.gmra.mrb[0].mxu0 %v167
  %v312 = vpop.f32.mrb[0].mxu0
  %v313 = vadd.f32 0.0, %v312
  %v314 = vpop.f32.mrb[0].mxu0
  %315 = vmatprep.mubr.f32.mxu0 0.0
  %316 = vmatmul.mubr.f32.gmra.mrb[0].mxu0 %v170
  %v317 = vpop.f32.mrb[0].mxu0
  %v318 = vadd.f32 0.0, %v317
  %v319 = vpop.f32.mrb[0].mxu0
  %320 = vmatprep.mubr.f32.mxu0 0.0
  %321 = vmatmul.mubr.f32.gmra.mrb[0].mxu0 %v173
  %v322 = vpop.f32.mrb[0].mxu0
  %v323 = vadd.f32 0.0, %v322
  %v324 = vpop.f32.mrb[0].mxu0
  %325 = vmatprep.mubr.f32.mxu0 0.0
  %326 = vmatmul.mubr.f32.gmra.mrb[0].mxu0 %v176
  %v327 = vpop.f32.mrb[0].mxu0
  %v328 = vadd.f32 0.0, %v327
  %v329 = vpop.f32.mrb[0].mxu0
  %330 = vmatprep.mubr.f32.mxu0 0.0
  %331 = vmatmul.mubr.f32.gmra.mrb[0].mxu0 %v179
  %v332 = vpop.f32.mrb[0].mxu0
  %v333 = vadd.f32 0.0, %v332
  %v334 = vpop.f32.mrb[0].mxu0
  %335 = vmatprep.mubr.f32.mxu0 0.0
  %336 = vmatmul.mubr.f32.gmra.mrb[0].mxu0 %v182
  %v337 = vpop.f32.mrb[0].mxu0
  %v338 = vadd.f32 0.0, %v337
  %v339 = vpop.f32.mrb[0].mxu0
  %340 = vmatprep.mubr.f32.mxu0 0.0
  %341 = vmatmul.mubr.f32.gmra.mrb[0].mxu0 %v185
  %v342 = vpop.f32.mrb[0].mxu0
  %v343 = vadd.f32 0.0, %v342
  %v344 = vpop.f32.mrb[0].mxu0
  %345 = vmatprep.mubr.f32.mxu0 0.0
  %346 = vmatmul.mubr.f32.gmra.mrb[0].mxu0 %v188
  %v347 = vpop.f32.mrb[0].mxu0
  %v348 = vadd.f32 0.0, %v347
  %v349 = vpop.f32.mrb[0].mxu0
  %350 = vmatprep.mubr.f32.mxu0 0.0
  %351 = vmatmul.mubr.f32.gmra.mrb[0].mxu0 %v191
  %v352 = vpop.f32.mrb[0].mxu0
  %v353 = vadd.f32 0.0, %v352
  %v354 = vpop.f32.mrb[0].mxu0
  %355 = vmatprep.mubr.f32.mxu0 0.0
  %356 = vmatmul.mubr.f32.gmra.mrb[0].mxu0 %v194
  %v357 = vpop.f32.mrb[0].mxu0
  %v358 = vadd.f32 0.0, %v357
  %v359 = vpop.f32.mrb[0].mxu0
  %360 = vmatprep.mubr.f32.mxu0 0.0
  %361 = vmatmul.mubr.f32.gmra.mrb[0].mxu0 %v197
  %v362 = vpop.f32.mrb[0].mxu0
  %v363 = vadd.f32 0.0, %v362
  %v364 = vpop.f32.mrb[0].mxu0
  %365 = vmatprep.mubr.f32.mxu0 0.0
  %366 = vmatmul.mubr.f32.gmra.mrb[0].mxu0 %v200
  %v367 = vpop.f32.mrb[0].mxu0
  %v368 = vadd.f32 0.0, %v367
  %v369 = vpop.f32.mrb[0].mxu0
  %370 = vmatprep.mubr.f32.mxu0 0.0
  %371 = vmatmul.mubr.f32.gmra.mrb[0].mxu0 %v203
  %v372 = vpop.f32.mrb[0].mxu0
  %v373 = vadd.f32 0.0, %v372
  %v374 = vpop.f32.mrb[0].mxu0
  %375 = vmatprep.mubr.f32.mxu0 0.0
  %376 = vmatmul.mubr.f32.gmra.mrb[0].mxu0 %v206
  %v377 = vpop.f32.mrb[0].mxu0
  %v378 = vadd.f32 0.0, %v377
  %v379 = vpop.f32.mrb[0].mxu0
  %380 = vmatprep.mubr.f32.mxu0 0.0
  %381 = vmatmul.mubr.f32.gmra.mrb[0].mxu0 %v209
  %v382 = vpop.f32.mrb[0].mxu0
  %v383 = vadd.f32 0.0, %v382
  %v384 = vpop.f32.mrb[0].mxu0
  %385 = vmatprep.mubr.f32.mxu0 0.0
  %386 = vmatmul.mubr.f32.gmra.mrb[0].mxu0 %v212
  %v387 = vpop.f32.mrb[0].mxu0
  %v388 = vadd.f32 0.0, %v387
  %v389 = vpop.f32.mrb[0].mxu0
  %390 = vmatprep.mubr.f32.mxu0 0.0
  %391 = vmatmul.mubr.f32.gmra.mrb[0].mxu0 %v215
  %v392 = vpop.f32.mrb[0].mxu0
  %v393 = vadd.f32 0.0, %v392
  %v394 = vpop.f32.mrb[0].mxu0
  %395 = vmatprep.mubr.f32.mxu0 0.0
  %396 = vmatmul.mubr.f32.gmra.mrb[0].mxu0 %v218
  %v397 = vpop.f32.mrb[0].mxu0
  %v398 = vadd.f32 0.0, %v397
  %v399 = vpop.f32.mrb[0].mxu0
  %400 = vmatprep.mubr.f32.mxu0 0.0
  %401 = vmatmul.mubr.f32.gmra.mrb[0].mxu0 %v221
  %v402 = vpop.f32.mrb[0].mxu0
  %v403 = vadd.f32 0.0, %v402
  %v404 = vpop.f32.mrb[0].mxu0
  %405 = vmatprep.mubr.f32.mxu0 0.0
  %406 = vmatmul.mubr.f32.gmra.mrb[0].mxu0 %v224
  %v407 = vpop.f32.mrb[0].mxu0
  %v408 = vadd.f32 0.0, %v407
  %v409 = vpop.f32.mrb[0].mxu0
  %410 = vdwg.mxu0
  %v411 = vmax.f32 %v293, %v298
  %v412 = vrot.slane %v411, 4
  %v413 = vmax.f32 %v411, %v412
  %v414 = vrot.slane %v413, 2
  %v415 = vmax.f32 %v413, %v414
  %v416 = vrot.slane %v415, 1
  %v417 = vmax.f32 %v415, %v416
  %v418 = vmax.f32 %v303, %v308
  %v419 = vrot.slane %v418, 4
  %v420 = vmax.f32 %v418, %v419
  %v421 = vrot.slane %v420, 2
  %v422 = vmax.f32 %v420, %v421
  %v423 = vrot.slane %v422, 1
  %v424 = vmax.f32 %v422, %v423
  %v425 = vmax.f32 %v313, %v318
  %v426 = vrot.slane %v425, 4
  %v427 = vmax.f32 %v425, %v426
  %v428 = vrot.slane %v427, 2
  %v429 = vmax.f32 %v427, %v428
  %v430 = vrot.slane %v429, 1
  %v431 = vmax.f32 %v429, %v430
  %v432 = vmax.f32 %v323, %v328
  %v433 = vrot.slane %v432, 4
  %v434 = vmax.f32 %v432, %v433
  %v435 = vrot.slane %v434, 2
  %v436 = vmax.f32 %v434, %v435
  %v437 = vrot.slane %v436, 1
  %v438 = vmax.f32 %v436, %v437
  %v439 = vsub.f32 %v293, %v417
  %v440 = vsub.f32 %v298, %v417
  %v441 = vsub.f32 %v303, %v424
  %v442 = vsub.f32 %v308, %v424
  %v443 = vsub.f32 %v313, %v431
  %v444 = vsub.f32 %v318, %v431
  %v445 = vsub.f32 %v323, %v438
  %v446 = vsub.f32 %v328, %v438
  %v447 = vmul.f32 %v439, 1.442695
  %v448 = vpow.pop %v447
  %v449 = vmul.f32 %v440, 1.442695
  %v450 = vpow.pop %v449
  %v451 = vmul.f32 %v441, 1.442695
  %v452 = vpow.pop %v451
  %v453 = vmul.f32 %v442, 1.442695
  %v454 = vpow.pop %v453
  %v455 = vmul.f32 %v443, 1.442695
  %v456 = vpow.pop %v455
  %v457 = vmul.f32 %v444, 1.442695
  %v458 = vpow.pop %v457
  %v459 = vmul.f32 %v445, 1.442695
  %v460 = vpow.pop %v459
  %v461 = vmul.f32 %v446, 1.442695
  %v462 = vpow.pop %v461
  %v463 = vadd.f32 %v448, %v450
  %v464 = vrot.slane %v463, 4
  %v465 = vadd.f32 %v463, %v464
  %v466 = vrot.slane %v465, 2
  %v467 = vadd.f32 %v465, %v466
  %v468 = vrot.slane %v467, 1
  %v469 = vadd.f32 %v467, %v468
  %v470 = vadd.f32 %v452, %v454
  %v471 = vrot.slane %v470, 4
  %v472 = vadd.f32 %v470, %v471
  %v473 = vrot.slane %v472, 2
  %v474 = vadd.f32 %v472, %v473
  %v475 = vrot.slane %v474, 1
  %v476 = vadd.f32 %v474, %v475
  %v477 = vadd.f32 %v456, %v458
  %v478 = vrot.slane %v477, 4
  %v479 = vadd.f32 %v477, %v478
  %v480 = vrot.slane %v479, 2
  %v481 = vadd.f32 %v479, %v480
  %v482 = vrot.slane %v481, 1
  %v483 = vadd.f32 %v481, %v482
  %v484 = vadd.f32 %v460, %v462
  %v485 = vrot.slane %v484, 4
  %v486 = vadd.f32 %v484, %v485
  %v487 = vrot.slane %v486, 2
  %v488 = vadd.f32 %v486, %v487
  %v489 = vrot.slane %v488, 1
  %v490 = vadd.f32 %v488, %v489
  %v491 = vrcp.pop %v469
  %v492 = vrcp.pop %v476
  %v493 = vrcp.pop %v483
  %v494 = vrcp.pop %v490
  %v495 = vmul.f32 %v448, %v491
  %v496 = vmul.f32 %v450, %v491
  %v497 = vmul.f32 %v452, %v492
  %v498 = vmul.f32 %v454, %v492
  %v499 = vmul.f32 %v456, %v493
  %v500 = vmul.f32 %v458, %v493
  %v501 = vmul.f32 %v460, %v494
  %v502 = vmul.f32 %v462, %v494
  %v503 = vmul.f32 %v495, 0.25
  %v504 = vmul.f32 %v496, 0.25
  %v505 = vmul.f32 %v497, 0.25
  %v506 = vmul.f32 %v498, 0.25
  %v507 = vmul.f32 %v499, 0.25
  %v508 = vmul.f32 %v500, 0.25
  %v509 = vmul.f32 %v501, 0.25
  %v510 = vmul.f32 %v502, 0.25
  %511 = vmax.xlane.f32.xlu0 %v333
  %v512 = vpop.xlane.xlu0 %511
  %513 = vmax.xlane.f32.xlu0 %v338
  %v514 = vpop.xlane.xlu0 %513
  %515 = vmax.xlane.f32.xlu0 %v343
  %v516 = vpop.xlane.xlu0 %515
  %517 = vmax.xlane.f32.xlu0 %v348
  %v518 = vpop.xlane.xlu0 %517
  %519 = vmax.xlane.f32.xlu0 %v353
  %v520 = vpop.xlane.xlu0 %519
  %521 = vmax.xlane.f32.xlu0 %v358
  %v522 = vpop.xlane.xlu0 %521
  %523 = vmax.xlane.f32.xlu0 %v363
  %v524 = vpop.xlane.xlu0 %523
  %525 = vmax.xlane.f32.xlu0 %v368
  %v526 = vpop.xlane.xlu0 %525
  %v527 = vsub.f32 %v333, %v512
  %v528 = vsub.f32 %v338, %v514
  %v529 = vsub.f32 %v343, %v516
  %v530 = vsub.f32 %v348, %v518
  %v531 = vsub.f32 %v353, %v520
  %v532 = vsub.f32 %v358, %v522
  %v533 = vsub.f32 %v363, %v524
  %v534 = vsub.f32 %v368, %v526
  %v535 = vmul.f32 %v527, 1.442695
  %v536 = vpow.pop %v535
  %v537 = vmul.f32 %v528, 1.442695
  %v538 = vpow.pop %v537
  %v539 = vmul.f32 %v529, 1.442695
  %v540 = vpow.pop %v539
  %v541 = vmul.f32 %v530, 1.442695
  %v542 = vpow.pop %v541
  %v543 = vmul.f32 %v531, 1.442695
  %v544 = vpow.pop %v543
  %v545 = vmul.f32 %v532, 1.442695
  %v546 = vpow.pop %v545
  %v547 = vmul.f32 %v533, 1.442695
  %v548 = vpow.pop %v547
  %v549 = vmul.f32 %v534, 1.442695
  %v550 = vpow.pop %v549
  %v551 = vlaneseq
  %v552 = vshrl.u32 %v551, 7
  %v553 = vadd.s32 %v552, 8
  %v554 = vadd.s32 %v552, 16
  %v555 = vadd.s32 %v552, 24
  %v556 = vadd.s32 %v552, 32
  %v557 = vadd.s32 %v552, 40
  %v558 = vadd.s32 %v552, 48
  %v559 = vadd.s32 %v552, 56
  %v560 = vadd.s32 %v552, 64
  %v561 = vadd.s32 %v552, 72
  %v562 = vadd.s32 %v552, 80
  %v563 = vadd.s32 %v552, 88
  %v564 = vadd.s32 %v552, 96
  %v565 = vadd.s32 %v552, 104
  %v566 = vadd.s32 %v552, 112
  %v567 = vadd.s32 %v552, 120
  %v568 = vshra.s32 %v552, 6
  %v569 = vshra.s32 %v553, 6
  %v570 = vshra.s32 %v554, 6
  %v571 = vshra.s32 %v555, 6
  %v572 = vshra.s32 %v556, 6
  %v573 = vshra.s32 %v557, 6
  %v574 = vshra.s32 %v558, 6
  %v575 = vshra.s32 %v559, 6
  %v576 = vshra.s32 %v560, 6
  %v577 = vshra.s32 %v561, 6
  %v578 = vshra.s32 %v562, 6
  %v579 = vshra.s32 %v563, 6
  %v580 = vshra.s32 %v564, 6
  %v581 = vshra.s32 %v565, 6
  %v582 = vshra.s32 %v566, 6
  %v583 = vshra.s32 %v567, 6
  %v584 = vshra.s32 %v22, 6
  %vm585 = vcmp.eq.s32.totalorder %v568, %v584
  %vm586 = vcmp.eq.s32.totalorder %v569, %v584
  %vm587 = vcmp.eq.s32.totalorder %v570, %v584
  %vm588 = vcmp.eq.s32.totalorder %v571, %v584
  %vm589 = vcmp.eq.s32.totalorder %v572, %v584
  %vm590 = vcmp.eq.s32.totalorder %v573, %v584
  %vm591 = vcmp.eq.s32.totalorder %v574, %v584
  %vm592 = vcmp.eq.s32.totalorder %v575, %v584
  %vm593 = vcmp.eq.s32.totalorder %v576, %v584
  %vm594 = vcmp.eq.s32.totalorder %v577, %v584
  %vm595 = vcmp.eq.s32.totalorder %v578, %v584
  %vm596 = vcmp.eq.s32.totalorder %v579, %v584
  %vm597 = vcmp.eq.s32.totalorder %v580, %v584
  %vm598 = vcmp.eq.s32.totalorder %v581, %v584
  %vm599 = vcmp.eq.s32.totalorder %v582, %v584
  %vm600 = vcmp.eq.s32.totalorder %v583, %v584
  %v601 = vsel %vm585, 1, 0
  %v602 = vsel %vm586, 1, 0
  %v603 = vsel %vm587, 1, 0
  %v604 = vsel %vm588, 1, 0
  %v605 = vsel %vm589, 1, 0
  %v606 = vsel %vm590, 1, 0
  %v607 = vsel %vm591, 1, 0
  %v608 = vsel %vm592, 1, 0
  %v609 = vsel %vm593, 1, 0
  %v610 = vsel %vm594, 1, 0
  %v611 = vsel %vm595, 1, 0
  %v612 = vsel %vm596, 1, 0
  %v613 = vsel %vm597, 1, 0
  %v614 = vsel %vm598, 1, 0
  %v615 = vsel %vm599, 1, 0
  %v616 = vsel %vm600, 1, 0
  %v617 = vcvt.s32.f32 %v601
  %v618 = vcvt.s32.f32 %v602
  %v619 = vcvt.s32.f32 %v603
  %v620 = vcvt.s32.f32 %v604
  %v621 = vcvt.s32.f32 %v605
  %v622 = vcvt.s32.f32 %v606
  %v623 = vcvt.s32.f32 %v607
  %v624 = vcvt.s32.f32 %v608
  %v625 = vcvt.s32.f32 %v609
  %v626 = vcvt.s32.f32 %v610
  %v627 = vcvt.s32.f32 %v611
  %v628 = vcvt.s32.f32 %v612
  %v629 = vcvt.s32.f32 %v613
  %v630 = vcvt.s32.f32 %v614
  %v631 = vcvt.s32.f32 %v615
  %v632 = vcvt.s32.f32 %v616
  %633 = vmatprep.subr.mxu0 0.0
  %634 = vmatpush1.msra.mxu0 %v617
  %635 = vmatprep.subr.mxu0 0.0
  %636 = vmatpush1.msra.mxu0 %v618
  %637 = vmatprep.subr.mxu0 0.0
  %638 = vmatpush1.msra.mxu0 %v619
  %639 = vmatprep.subr.mxu0 0.0
  %640 = vmatpush1.msra.mxu0 %v620
  %641 = vmatprep.subr.mxu0 0.0
  %642 = vmatpush1.msra.mxu0 %v621
  %643 = vmatprep.subr.mxu0 0.0
  %644 = vmatpush1.msra.mxu0 %v622
  %645 = vmatprep.subr.mxu0 0.0
  %646 = vmatpush1.msra.mxu0 %v623
  %647 = vmatprep.subr.mxu0 0.0
  %648 = vmatpush1.msra.mxu0 %v624
  %649 = vmatprep.subr.mxu0 0.0
  %650 = vmatpush1.msra.mxu0 %v625
  %651 = vmatprep.subr.mxu0 0.0
  %652 = vmatpush1.msra.mxu0 %v626
  %653 = vmatprep.subr.mxu0 0.0
  %654 = vmatpush1.msra.mxu0 %v627
  %655 = vmatprep.subr.mxu0 0.0
  %656 = vmatpush1.msra.mxu0 %v628
  %657 = vmatprep.subr.mxu0 0.0
  %658 = vmatpush1.msra.mxu0 %v629
  %659 = vmatprep.subr.mxu0 0.0
  %660 = vmatpush1.msra.mxu0 %v630
  %661 = vmatprep.subr.mxu0 0.0
  %662 = vmatpush1.msra.mxu0 %v631
  %663 = vmatprep.subr.mxu0 0.0
  %664 = vmatpush1.msra.mxu0 %v632
  %665 = vmatprep.subr.mxu0 0.0
  %666 = vmatpush1.msra.mxu0 0.0
  %667 = vmatprep.subr.mxu0 0.0
  %668 = vmatpush1.msra.mxu0 0.0
  %669 = vmatprep.subr.mxu0 0.0
  %670 = vmatpush1.msra.mxu0 0.0
  %671 = vmatprep.subr.mxu0 0.0
  %672 = vmatpush1.msra.mxu0 0.0
  %673 = vmatprep.subr.mxu0 0.0
  %674 = vmatpush1.msra.mxu0 0.0
  %675 = vmatprep.subr.mxu0 0.0
  %676 = vmatpush1.msra.mxu0 0.0
  %677 = vmatprep.subr.mxu0 0.0
  %678 = vmatpush1.msra.mxu0 0.0
  %679 = vmatprep.subr.mxu0 0.0
  %680 = vmatpush1.msra.mxu0 0.0
  %681 = vmatprep.subr.mxu0 0.0
  %682 = vmatpush1.msra.mxu0 0.0
  %683 = vmatprep.subr.mxu0 0.0
  %684 = vmatpush1.msra.mxu0 0.0
  %685 = vmatprep.subr.mxu0 0.0
  %686 = vmatpush1.msra.mxu0 0.0
  %687 = vmatprep.subr.mxu0 0.0
  %688 = vmatpush1.msra.mxu0 0.0
  %689 = vmatprep.subr.mxu0 0.0
  %690 = vmatpush1.msra.mxu0 0.0
  %691 = vmatprep.subr.mxu0 0.0
  %692 = vmatpush1.msra.mxu0 0.0
  %693 = vmatprep.subr.mxu0 0.0
  %694 = vmatpush1.msra.mxu0 0.0
  %695 = vmatprep.subr.mxu0 0.0
  %696 = vmatpush1.msra.mxu0 0.0
  %697 = vmatprep.mubr.f32.mxu0 0.0
  %698 = vmatmul.mubr.f32.gmra.mrb[0].mxu0 %v536
  %v699 = vpop.f32.mrb[0].mxu0
  %v700 = vadd.f32 0.0, %v699
  %v701 = vpop.f32.mrb[0].mxu0
  %702 = vmatprep.mubr.f32.mxu0 0.0
  %703 = vmatmul.mubr.f32.gmra.mrb[0].mxu0 %v538
  %v704 = vpop.f32.mrb[0].mxu0
  %v705 = vadd.f32 0.0, %v704
  %v706 = vpop.f32.mrb[0].mxu0
  %707 = vmatprep.mubr.f32.mxu0 0.0
  %708 = vmatmul.mubr.f32.gmra.mrb[0].mxu0 %v540
  %v709 = vpop.f32.mrb[0].mxu0
  %v710 = vadd.f32 0.0, %v709
  %v711 = vpop.f32.mrb[0].mxu0
  %712 = vmatprep.mubr.f32.mxu0 0.0
  %713 = vmatmul.mubr.f32.gmra.mrb[0].mxu0 %v542
  %v714 = vpop.f32.mrb[0].mxu0
  %v715 = vadd.f32 0.0, %v714
  %v716 = vpop.f32.mrb[0].mxu0
  %717 = vmatprep.mubr.f32.mxu0 0.0
  %718 = vmatmul.mubr.f32.gmra.mrb[0].mxu0 %v544
  %v719 = vpop.f32.mrb[0].mxu0
  %v720 = vadd.f32 0.0, %v719
  %v721 = vpop.f32.mrb[0].mxu0
  %722 = vmatprep.mubr.f32.mxu0 0.0
  %723 = vmatmul.mubr.f32.gmra.mrb[0].mxu0 %v546
  %v724 = vpop.f32.mrb[0].mxu0
  %v725 = vadd.f32 0.0, %v724
  %v726 = vpop.f32.mrb[0].mxu0
  %727 = vmatprep.mubr.f32.mxu0 0.0
  %728 = vmatmul.mubr.f32.gmra.mrb[0].mxu0 %v548
  %v729 = vpop.f32.mrb[0].mxu0
  %v730 = vadd.f32 0.0, %v729
  %v731 = vpop.f32.mrb[0].mxu0
  %732 = vmatprep.mubr.f32.mxu0 0.0
  %733 = vmatmul.mubr.f32.gmra.mrb[0].mxu0 %v550
  %v734 = vpop.f32.mrb[0].mxu0
  %v735 = vadd.f32 0.0, %v734
  %v736 = vpop.f32.mrb[0].mxu0
  %737 = vdwg.mxu0
  %v738 = vrcp.pop %v700
  %v739 = vrcp.pop %v705
  %v740 = vrcp.pop %v710
  %v741 = vrcp.pop %v715
  %v742 = vrcp.pop %v720
  %v743 = vrcp.pop %v725
  %v744 = vrcp.pop %v730
  %v745 = vrcp.pop %v735
  %v746 = vmul.f32 %v536, %v738
  %v747 = vmul.f32 %v538, %v739
  %v748 = vmul.f32 %v540, %v740
  %v749 = vmul.f32 %v542, %v741
  %v750 = vmul.f32 %v544, %v742
  %v751 = vmul.f32 %v546, %v743
  %v752 = vmul.f32 %v548, %v744
  %v753 = vmul.f32 %v550, %v745
  %754 = vxpose.xlu0.b32.start [1/16] %v746, 128
  %755 = vxpose.xlu0.b32.cont [2/16] %v747, 128
  %756 = vxpose.xlu0.b32.cont [3/16] 0.0, 128
  %757 = vxpose.xlu0.b32.cont [4/16] 0.0, 128
  %758 = vxpose.xlu0.b32.cont [5/16] 0.0, 128
  %759 = vxpose.xlu0.b32.cont [6/16] 0.0, 128
  %760 = vxpose.xlu0.b32.cont [7/16] 0.0, 128
  %761 = vxpose.xlu0.b32.cont [8/16] 0.0, 128
  %762 = vxpose.xlu0.b32.cont [9/16] 0.0, 128
  %763 = vxpose.xlu0.b32.cont [10/16] 0.0, 128
  %764 = vxpose.xlu0.b32.cont [11/16] 0.0, 128
  %765 = vxpose.xlu0.b32.cont [12/16] 0.0, 128
  %766 = vxpose.xlu0.b32.cont [13/16] 0.0, 128
  %767 = vxpose.xlu0.b32.cont [14/16] 0.0, 128
  %768 = vxpose.xlu0.b32.cont [15/16] 0.0, 128
  %769 = vxpose.xlu0.b32.end [16/16] 0.0, 128
  %v770 = vpop.trf.xlu0
  %v771 = vpop.trf.xlu0
  %v772 = vpop.trf.xlu0
  %v773 = vpop.trf.xlu0
  %v774 = vpop.trf.xlu0
  %v775 = vpop.trf.xlu0
  %v776 = vpop.trf.xlu0
  %v777 = vpop.trf.xlu0
  %v778 = vpop.trf.xlu0
  %v779 = vpop.trf.xlu0
  %v780 = vpop.trf.xlu0
  %v781 = vpop.trf.xlu0
  %v782 = vpop.trf.xlu0
  %v783 = vpop.trf.xlu0
  %v784 = vpop.trf.xlu0
  %v785 = vpop.trf.xlu0
  %v787 = vsel %vm153, %v770, 0
  %v790 = vsel %vm153, %v771, 0
  %v793 = vsel %vm153, %v772, 0
  %v796 = vsel %vm153, %v773, 0
  %v799 = vsel %vm153, %v774, 0
  %v802 = vsel %vm153, %v775, 0
  %v805 = vsel %vm153, %v776, 0
  %v808 = vsel %vm153, %v777, 0
  %v811 = vsel %vm153, %v778, 0
  %v814 = vsel %vm153, %v779, 0
  %v817 = vsel %vm153, %v780, 0
  %v820 = vsel %vm153, %v781, 0
  %v823 = vsel %vm153, %v782, 0
  %v826 = vsel %vm153, %v783, 0
  %v829 = vsel %vm153, %v784, 0
  %v832 = vsel %vm153, %v785, 0
  %834 = vmatprep.subr.mxu0 0.0
  %835 = vmatpush1.msra.mxu0 %v503
  %836 = vmatprep.subr.mxu0 0.0
  %837 = vmatpush1.msra.mxu0 %v504
  %838 = vmatprep.subr.mxu0 0.0
  %839 = vmatpush1.msra.mxu0 0.0
  %840 = vmatprep.subr.mxu0 0.0
  %841 = vmatpush1.msra.mxu0 0.0
  %842 = vmatprep.subr.mxu0 0.0
  %843 = vmatpush1.msra.mxu0 0.0
  %844 = vmatprep.subr.mxu0 0.0
  %845 = vmatpush1.msra.mxu0 0.0
  %846 = vmatprep.subr.mxu0 0.0
  %847 = vmatpush1.msra.mxu0 0.0
  %848 = vmatprep.subr.mxu0 0.0
  %849 = vmatpush1.msra.mxu0 0.0
  %850 = vmatprep.subr.mxu0 0.0
  %851 = vmatpush1.msra.mxu0 0.0
  %852 = vmatprep.subr.mxu0 0.0
  %853 = vmatpush1.msra.mxu0 0.0
  %854 = vmatprep.subr.mxu0 0.0
  %855 = vmatpush1.msra.mxu0 0.0
  %856 = vmatprep.subr.mxu0 0.0
  %857 = vmatpush1.msra.mxu0 0.0
  %858 = vmatprep.subr.mxu0 0.0
  %859 = vmatpush1.msra.mxu0 0.0
  %860 = vmatprep.subr.mxu0 0.0
  %861 = vmatpush1.msra.mxu0 0.0
  %862 = vmatprep.subr.mxu0 0.0
  %863 = vmatpush1.msra.mxu0 0.0
  %864 = vmatprep.subr.mxu0 0.0
  %865 = vmatpush1.msra.mxu0 0.0
  %866 = vmatprep.subr.mxu0 0.0
  %867 = vmatpush1.msra.mxu0 0.0
  %868 = vmatprep.subr.mxu0 0.0
  %869 = vmatpush1.msra.mxu0 0.0
  %870 = vmatprep.subr.mxu0 0.0
  %871 = vmatpush1.msra.mxu0 0.0
  %872 = vmatprep.subr.mxu0 0.0
  %873 = vmatpush1.msra.mxu0 0.0
  %874 = vmatprep.subr.mxu0 0.0
  %875 = vmatpush1.msra.mxu0 0.0
  %876 = vmatprep.subr.mxu0 0.0
  %877 = vmatpush1.msra.mxu0 0.0
  %878 = vmatprep.subr.mxu0 0.0
  %879 = vmatpush1.msra.mxu0 0.0
  %880 = vmatprep.subr.mxu0 0.0
  %881 = vmatpush1.msra.mxu0 0.0
  %882 = vmatprep.subr.mxu0 0.0
  %883 = vmatpush1.msra.mxu0 0.0
  %884 = vmatprep.subr.mxu0 0.0
  %885 = vmatpush1.msra.mxu0 0.0
  %886 = vmatprep.subr.mxu0 0.0
  %887 = vmatpush1.msra.mxu0 0.0
  %888 = vmatprep.subr.mxu0 0.0
  %889 = vmatpush1.msra.mxu0 0.0
  %890 = vmatprep.subr.mxu0 0.0
  %891 = vmatpush1.msra.mxu0 0.0
  %892 = vmatprep.subr.mxu0 0.0
  %893 = vmatpush1.msra.mxu0 0.0
  %894 = vmatprep.subr.mxu0 0.0
  %895 = vmatpush1.msra.mxu0 0.0
  %896 = vmatprep.subr.mxu0 0.0
  %897 = vmatpush1.msra.mxu0 0.0
  %898 = vmatprep.mubr.f32.mxu0 0.0
  %899 = vmatmul.mubr.f32.gmra.mrb[0].mxu0 %v787
  %v900 = vpop.f32.mrb[0].mxu0
  %v901 = vadd.f32 0.0, %v900
  %v902 = vpop.f32.mrb[0].mxu0
  %903 = vmatprep.mubr.f32.mxu0 0.0
  %904 = vmatmul.mubr.f32.gmra.mrb[0].mxu0 %v790
  %v905 = vpop.f32.mrb[0].mxu0
  %v906 = vadd.f32 0.0, %v905
  %v907 = vpop.f32.mrb[0].mxu0
  %908 = vmatprep.mubr.f32.mxu0 0.0
  %909 = vmatmul.mubr.f32.gmra.mrb[0].mxu0 %v793
  %v910 = vpop.f32.mrb[0].mxu0
  %v911 = vadd.f32 0.0, %v910
  %v912 = vpop.f32.mrb[0].mxu0
  %913 = vmatprep.mubr.f32.mxu0 0.0
  %914 = vmatmul.mubr.f32.gmra.mrb[0].mxu0 %v796
  %v915 = vpop.f32.mrb[0].mxu0
  %v916 = vadd.f32 0.0, %v915
  %v917 = vpop.f32.mrb[0].mxu0
  %918 = vmatprep.mubr.f32.mxu0 0.0
  %919 = vmatmul.mubr.f32.gmra.mrb[0].mxu0 %v799
  %v920 = vpop.f32.mrb[0].mxu0
  %v921 = vadd.f32 0.0, %v920
  %v922 = vpop.f32.mrb[0].mxu0
  %923 = vmatprep.mubr.f32.mxu0 0.0
  %924 = vmatmul.mubr.f32.gmra.mrb[0].mxu0 %v802
  %v925 = vpop.f32.mrb[0].mxu0
  %v926 = vadd.f32 0.0, %v925
  %v927 = vpop.f32.mrb[0].mxu0
  %928 = vmatprep.mubr.f32.mxu0 0.0
  %929 = vmatmul.mubr.f32.gmra.mrb[0].mxu0 %v805
  %v930 = vpop.f32.mrb[0].mxu0
  %v931 = vadd.f32 0.0, %v930
  %v932 = vpop.f32.mrb[0].mxu0
  %933 = vmatprep.mubr.f32.mxu0 0.0
  %934 = vmatmul.mubr.f32.gmra.mrb[0].mxu0 %v808
  %v935 = vpop.f32.mrb[0].mxu0
  %v936 = vadd.f32 0.0, %v935
  %v937 = vpop.f32.mrb[0].mxu0
  %938 = vmatprep.mubr.f32.mxu0 0.0
  %939 = vmatmul.mubr.f32.gmra.mrb[0].mxu0 %v811
  %v940 = vpop.f32.mrb[0].mxu0
  %v941 = vadd.f32 0.0, %v940
  %v942 = vpop.f32.mrb[0].mxu0
  %943 = vmatprep.mubr.f32.mxu0 0.0
  %944 = vmatmul.mubr.f32.gmra.mrb[0].mxu0 %v814
  %v945 = vpop.f32.mrb[0].mxu0
  %v946 = vadd.f32 0.0, %v945
  %v947 = vpop.f32.mrb[0].mxu0
  %948 = vmatprep.mubr.f32.mxu0 0.0
  %949 = vmatmul.mubr.f32.gmra.mrb[0].mxu0 %v817
  %v950 = vpop.f32.mrb[0].mxu0
  %v951 = vadd.f32 0.0, %v950
  %v952 = vpop.f32.mrb[0].mxu0
  %953 = vmatprep.mubr.f32.mxu0 0.0
  %954 = vmatmul.mubr.f32.gmra.mrb[0].mxu0 %v820
  %v955 = vpop.f32.mrb[0].mxu0
  %v956 = vadd.f32 0.0, %v955
  %v957 = vpop.f32.mrb[0].mxu0
  %958 = vmatprep.mubr.f32.mxu0 0.0
  %959 = vmatmul.mubr.f32.gmra.mrb[0].mxu0 %v823
  %v960 = vpop.f32.mrb[0].mxu0
  %v961 = vadd.f32 0.0, %v960
  %v962 = vpop.f32.mrb[0].mxu0
  %963 = vmatprep.mubr.f32.mxu0 0.0
  %964 = vmatmul.mubr.f32.gmra.mrb[0].mxu0 %v826
  %v965 = vpop.f32.mrb[0].mxu0
  %v966 = vadd.f32 0.0, %v965
  %v967 = vpop.f32.mrb[0].mxu0
  %968 = vmatprep.mubr.f32.mxu0 0.0
  %969 = vmatmul.mubr.f32.gmra.mrb[0].mxu0 %v829
  %v970 = vpop.f32.mrb[0].mxu0
  %v971 = vadd.f32 0.0, %v970
  %v972 = vpop.f32.mrb[0].mxu0
  %973 = vmatprep.mubr.f32.mxu0 0.0
  %974 = vmatmul.mubr.f32.gmra.mrb[0].mxu0 %v832
  %v975 = vpop.f32.mrb[0].mxu0
  %v976 = vadd.f32 0.0, %v975
  %v977 = vpop.f32.mrb[0].mxu0
  %978 = vdwg.mxu0
  %979 = vxpose.xlu0.b32.start [1/16] %v748, 128
  %980 = vxpose.xlu0.b32.cont [2/16] %v749, 128
  %981 = vxpose.xlu0.b32.cont [3/16] 0.0, 128
  %982 = vxpose.xlu0.b32.cont [4/16] 0.0, 128
  %983 = vxpose.xlu0.b32.cont [5/16] 0.0, 128
  %984 = vxpose.xlu0.b32.cont [6/16] 0.0, 128
  %985 = vxpose.xlu0.b32.cont [7/16] 0.0, 128
  %986 = vxpose.xlu0.b32.cont [8/16] 0.0, 128
  %987 = vxpose.xlu0.b32.cont [9/16] 0.0, 128
  %988 = vxpose.xlu0.b32.cont [10/16] 0.0, 128
  %989 = vxpose.xlu0.b32.cont [11/16] 0.0, 128
  %990 = vxpose.xlu0.b32.cont [12/16] 0.0, 128
  %991 = vxpose.xlu0.b32.cont [13/16] 0.0, 128
  %992 = vxpose.xlu0.b32.cont [14/16] 0.0, 128
  %993 = vxpose.xlu0.b32.cont [15/16] 0.0, 128
  %994 = vxpose.xlu0.b32.end [16/16] 0.0, 128
  %v995 = vpop.trf.xlu0
  %v996 = vpop.trf.xlu0
  %v997 = vpop.trf.xlu0
  %v998 = vpop.trf.xlu0
  %v999 = vpop.trf.xlu0
  %v1000 = vpop.trf.xlu0
  %v1001 = vpop.trf.xlu0
  %v1002 = vpop.trf.xlu0
  %v1003 = vpop.trf.xlu0
  %v1004 = vpop.trf.xlu0
  %v1005 = vpop.trf.xlu0
  %v1006 = vpop.trf.xlu0
  %v1007 = vpop.trf.xlu0
  %v1008 = vpop.trf.xlu0
  %v1009 = vpop.trf.xlu0
  %v1010 = vpop.trf.xlu0
  %v1012 = vsel %vm153, %v995, 0
  %v1015 = vsel %vm153, %v996, 0
  %v1018 = vsel %vm153, %v997, 0
  %v1021 = vsel %vm153, %v998, 0
  %v1024 = vsel %vm153, %v999, 0
  %v1027 = vsel %vm153, %v1000, 0
  %v1030 = vsel %vm153, %v1001, 0
  %v1033 = vsel %vm153, %v1002, 0
  %v1036 = vsel %vm153, %v1003, 0
  %v1039 = vsel %vm153, %v1004, 0
  %v1042 = vsel %vm153, %v1005, 0
  %v1045 = vsel %vm153, %v1006, 0
  %v1048 = vsel %vm153, %v1007, 0
  %v1051 = vsel %vm153, %v1008, 0
  %v1054 = vsel %vm153, %v1009, 0
  %v1057 = vsel %vm153, %v1010, 0
  %1059 = vmatprep.subr.mxu0 0.0
  %1060 = vmatpush1.msra.mxu0 %v505
  %1061 = vmatprep.subr.mxu0 0.0
  %1062 = vmatpush1.msra.mxu0 %v506
  %1063 = vmatprep.subr.mxu0 0.0
  %1064 = vmatpush1.msra.mxu0 0.0
  %1065 = vmatprep.subr.mxu0 0.0
  %1066 = vmatpush1.msra.mxu0 0.0
  %1067 = vmatprep.subr.mxu0 0.0
  %1068 = vmatpush1.msra.mxu0 0.0
  %1069 = vmatprep.subr.mxu0 0.0
  %1070 = vmatpush1.msra.mxu0 0.0
  %1071 = vmatprep.subr.mxu0 0.0
  %1072 = vmatpush1.msra.mxu0 0.0
  %1073 = vmatprep.subr.mxu0 0.0
  %1074 = vmatpush1.msra.mxu0 0.0
  %1075 = vmatprep.subr.mxu0 0.0
  %1076 = vmatpush1.msra.mxu0 0.0
  %1077 = vmatprep.subr.mxu0 0.0
  %1078 = vmatpush1.msra.mxu0 0.0
  %1079 = vmatprep.subr.mxu0 0.0
  %1080 = vmatpush1.msra.mxu0 0.0
  %1081 = vmatprep.subr.mxu0 0.0
  %1082 = vmatpush1.msra.mxu0 0.0
  %1083 = vmatprep.subr.mxu0 0.0
  %1084 = vmatpush1.msra.mxu0 0.0
  %1085 = vmatprep.subr.mxu0 0.0
  %1086 = vmatpush1.msra.mxu0 0.0
  %1087 = vmatprep.subr.mxu0 0.0
  %1088 = vmatpush1.msra.mxu0 0.0
  %1089 = vmatprep.subr.mxu0 0.0
  %1090 = vmatpush1.msra.mxu0 0.0
  %1091 = vmatprep.subr.mxu0 0.0
  %1092 = vmatpush1.msra.mxu0 0.0
  %1093 = vmatprep.subr.mxu0 0.0
  %1094 = vmatpush1.msra.mxu0 0.0
  %1095 = vmatprep.subr.mxu0 0.0
  %1096 = vmatpush1.msra.mxu0 0.0
  %1097 = vmatprep.subr.mxu0 0.0
  %1098 = vmatpush1.msra.mxu0 0.0
  %1099 = vmatprep.subr.mxu0 0.0
  %1100 = vmatpush1.msra.mxu0 0.0
  %1101 = vmatprep.subr.mxu0 0.0
  %1102 = vmatpush1.msra.mxu0 0.0
  %1103 = vmatprep.subr.mxu0 0.0
  %1104 = vmatpush1.msra.mxu0 0.0
  %1105 = vmatprep.subr.mxu0 0.0
  %1106 = vmatpush1.msra.mxu0 0.0
  %1107 = vmatprep.subr.mxu0 0.0
  %1108 = vmatpush1.msra.mxu0 0.0
  %1109 = vmatprep.subr.mxu0 0.0
  %1110 = vmatpush1.msra.mxu0 0.0
  %1111 = vmatprep.subr.mxu0 0.0
  %1112 = vmatpush1.msra.mxu0 0.0
  %1113 = vmatprep.subr.mxu0 0.0
  %1114 = vmatpush1.msra.mxu0 0.0
  %1115 = vmatprep.subr.mxu0 0.0
  %1116 = vmatpush1.msra.mxu0 0.0
  %1117 = vmatprep.subr.mxu0 0.0
  %1118 = vmatpush1.msra.mxu0 0.0
  %1119 = vmatprep.subr.mxu0 0.0
  %1120 = vmatpush1.msra.mxu0 0.0
  %1121 = vmatprep.subr.mxu0 0.0
  %1122 = vmatpush1.msra.mxu0 0.0
  %1123 = vmatprep.mubr.f32.mxu0 0.0
  %1124 = vmatmul.mubr.f32.gmra.mrb[0].mxu0 %v1012
  %v1125 = vpop.f32.mrb[0].mxu0
  %v1126 = vadd.f32 0.0, %v1125
  %v1127 = vpop.f32.mrb[0].mxu0
  %1128 = vmatprep.mubr.f32.mxu0 0.0
  %1129 = vmatmul.mubr.f32.gmra.mrb[0].mxu0 %v1015
  %v1130 = vpop.f32.mrb[0].mxu0
  %v1131 = vadd.f32 0.0, %v1130
  %v1132 = vpop.f32.mrb[0].mxu0
  %1133 = vmatprep.mubr.f32.mxu0 0.0
  %1134 = vmatmul.mubr.f32.gmra.mrb[0].mxu0 %v1018
  %v1135 = vpop.f32.mrb[0].mxu0
  %v1136 = vadd.f32 0.0, %v1135
  %v1137 = vpop.f32.mrb[0].mxu0
  %1138 = vmatprep.mubr.f32.mxu0 0.0
  %1139 = vmatmul.mubr.f32.gmra.mrb[0].mxu0 %v1021
  %v1140 = vpop.f32.mrb[0].mxu0
  %v1141 = vadd.f32 0.0, %v1140
  %v1142 = vpop.f32.mrb[0].mxu0
  %1143 = vmatprep.mubr.f32.mxu0 0.0
  %1144 = vmatmul.mubr.f32.gmra.mrb[0].mxu0 %v1024
  %v1145 = vpop.f32.mrb[0].mxu0
  %v1146 = vadd.f32 0.0, %v1145
  %v1147 = vpop.f32.mrb[0].mxu0
  %1148 = vmatprep.mubr.f32.mxu0 0.0
  %1149 = vmatmul.mubr.f32.gmra.mrb[0].mxu0 %v1027
  %v1150 = vpop.f32.mrb[0].mxu0
  %v1151 = vadd.f32 0.0, %v1150
  %v1152 = vpop.f32.mrb[0].mxu0
  %1153 = vmatprep.mubr.f32.mxu0 0.0
  %1154 = vmatmul.mubr.f32.gmra.mrb[0].mxu0 %v1030
  %v1155 = vpop.f32.mrb[0].mxu0
  %v1156 = vadd.f32 0.0, %v1155
  %v1157 = vpop.f32.mrb[0].mxu0
  %1158 = vmatprep.mubr.f32.mxu0 0.0
  %1159 = vmatmul.mubr.f32.gmra.mrb[0].mxu0 %v1033
  %v1160 = vpop.f32.mrb[0].mxu0
  %v1161 = vadd.f32 0.0, %v1160
  %v1162 = vpop.f32.mrb[0].mxu0
  %1163 = vmatprep.mubr.f32.mxu0 0.0
  %1164 = vmatmul.mubr.f32.gmra.mrb[0].mxu0 %v1036
  %v1165 = vpop.f32.mrb[0].mxu0
  %v1166 = vadd.f32 0.0, %v1165
  %v1167 = vpop.f32.mrb[0].mxu0
  %1168 = vmatprep.mubr.f32.mxu0 0.0
  %1169 = vmatmul.mubr.f32.gmra.mrb[0].mxu0 %v1039
  %v1170 = vpop.f32.mrb[0].mxu0
  %v1171 = vadd.f32 0.0, %v1170
  %v1172 = vpop.f32.mrb[0].mxu0
  %1173 = vmatprep.mubr.f32.mxu0 0.0
  %1174 = vmatmul.mubr.f32.gmra.mrb[0].mxu0 %v1042
  %v1175 = vpop.f32.mrb[0].mxu0
  %v1176 = vadd.f32 0.0, %v1175
  %v1177 = vpop.f32.mrb[0].mxu0
  %1178 = vmatprep.mubr.f32.mxu0 0.0
  %1179 = vmatmul.mubr.f32.gmra.mrb[0].mxu0 %v1045
  %v1180 = vpop.f32.mrb[0].mxu0
  %v1181 = vadd.f32 0.0, %v1180
  %v1182 = vpop.f32.mrb[0].mxu0
  %1183 = vmatprep.mubr.f32.mxu0 0.0
  %1184 = vmatmul.mubr.f32.gmra.mrb[0].mxu0 %v1048
  %v1185 = vpop.f32.mrb[0].mxu0
  %v1186 = vadd.f32 0.0, %v1185
  %v1187 = vpop.f32.mrb[0].mxu0
  %1188 = vmatprep.mubr.f32.mxu0 0.0
  %1189 = vmatmul.mubr.f32.gmra.mrb[0].mxu0 %v1051
  %v1190 = vpop.f32.mrb[0].mxu0
  %v1191 = vadd.f32 0.0, %v1190
  %v1192 = vpop.f32.mrb[0].mxu0
  %1193 = vmatprep.mubr.f32.mxu0 0.0
  %1194 = vmatmul.mubr.f32.gmra.mrb[0].mxu0 %v1054
  %v1195 = vpop.f32.mrb[0].mxu0
  %v1196 = vadd.f32 0.0, %v1195
  %v1197 = vpop.f32.mrb[0].mxu0
  %1198 = vmatprep.mubr.f32.mxu0 0.0
  %1199 = vmatmul.mubr.f32.gmra.mrb[0].mxu0 %v1057
  %v1200 = vpop.f32.mrb[0].mxu0
  %v1201 = vadd.f32 0.0, %v1200
  %v1202 = vpop.f32.mrb[0].mxu0
  %1203 = vdwg.mxu0
  %1204 = vxpose.xlu0.b32.start [1/16] %v750, 128
  %1205 = vxpose.xlu0.b32.cont [2/16] %v751, 128
  %1206 = vxpose.xlu0.b32.cont [3/16] 0.0, 128
  %1207 = vxpose.xlu0.b32.cont [4/16] 0.0, 128
  %1208 = vxpose.xlu0.b32.cont [5/16] 0.0, 128
  %1209 = vxpose.xlu0.b32.cont [6/16] 0.0, 128
  %1210 = vxpose.xlu0.b32.cont [7/16] 0.0, 128
  %1211 = vxpose.xlu0.b32.cont [8/16] 0.0, 128
  %1212 = vxpose.xlu0.b32.cont [9/16] 0.0, 128
  %1213 = vxpose.xlu0.b32.cont [10/16] 0.0, 128
  %1214 = vxpose.xlu0.b32.cont [11/16] 0.0, 128
  %1215 = vxpose.xlu0.b32.cont [12/16] 0.0, 128
  %1216 = vxpose.xlu0.b32.cont [13/16] 0.0, 128
  %1217 = vxpose.xlu0.b32.cont [14/16] 0.0, 128
  %1218 = vxpose.xlu0.b32.cont [15/16] 0.0, 128
  %1219 = vxpose.xlu0.b32.end [16/16] 0.0, 128
  %v1220 = vpop.trf.xlu0
  %v1221 = vpop.trf.xlu0
  %v1222 = vpop.trf.xlu0
  %v1223 = vpop.trf.xlu0
  %v1224 = vpop.trf.xlu0
  %v1225 = vpop.trf.xlu0
  %v1226 = vpop.trf.xlu0
  %v1227 = vpop.trf.xlu0
  %v1228 = vpop.trf.xlu0
  %v1229 = vpop.trf.xlu0
  %v1230 = vpop.trf.xlu0
  %v1231 = vpop.trf.xlu0
  %v1232 = vpop.trf.xlu0
  %v1233 = vpop.trf.xlu0
  %v1234 = vpop.trf.xlu0
  %v1235 = vpop.trf.xlu0
  %v1237 = vsel %vm153, %v1220, 0
  %v1240 = vsel %vm153, %v1221, 0
  %v1243 = vsel %vm153, %v1222, 0
  %v1246 = vsel %vm153, %v1223, 0
  %v1249 = vsel %vm153, %v1224, 0
  %v1252 = vsel %vm153, %v1225, 0
  %v1255 = vsel %vm153, %v1226, 0
  %v1258 = vsel %vm153, %v1227, 0
  %v1261 = vsel %vm153, %v1228, 0
  %v1264 = vsel %vm153, %v1229, 0
  %v1267 = vsel %vm153, %v1230, 0
  %v1270 = vsel %vm153, %v1231, 0
  %v1273 = vsel %vm153, %v1232, 0
  %v1276 = vsel %vm153, %v1233, 0
  %v1279 = vsel %vm153, %v1234, 0
  %v1282 = vsel %vm153, %v1235, 0
  %1284 = vmatprep.subr.mxu0 0.0
  %1285 = vmatpush1.msra.mxu0 %v507
  %1286 = vmatprep.subr.mxu0 0.0
  %1287 = vmatpush1.msra.mxu0 %v508
  %1288 = vmatprep.subr.mxu0 0.0
  %1289 = vmatpush1.msra.mxu0 0.0
  %1290 = vmatprep.subr.mxu0 0.0
  %1291 = vmatpush1.msra.mxu0 0.0
  %1292 = vmatprep.subr.mxu0 0.0
  %1293 = vmatpush1.msra.mxu0 0.0
  %1294 = vmatprep.subr.mxu0 0.0
  %1295 = vmatpush1.msra.mxu0 0.0
  %1296 = vmatprep.subr.mxu0 0.0
  %1297 = vmatpush1.msra.mxu0 0.0
  %1298 = vmatprep.subr.mxu0 0.0
  %1299 = vmatpush1.msra.mxu0 0.0
  %1300 = vmatprep.subr.mxu0 0.0
  %1301 = vmatpush1.msra.mxu0 0.0
  %1302 = vmatprep.subr.mxu0 0.0
  %1303 = vmatpush1.msra.mxu0 0.0
  %1304 = vmatprep.subr.mxu0 0.0
  %1305 = vmatpush1.msra.mxu0 0.0
  %1306 = vmatprep.subr.mxu0 0.0
  %1307 = vmatpush1.msra.mxu0 0.0
  %1308 = vmatprep.subr.mxu0 0.0
  %1309 = vmatpush1.msra.mxu0 0.0
  %1310 = vmatprep.subr.mxu0 0.0
  %1311 = vmatpush1.msra.mxu0 0.0
  %1312 = vmatprep.subr.mxu0 0.0
  %1313 = vmatpush1.msra.mxu0 0.0
  %1314 = vmatprep.subr.mxu0 0.0
  %1315 = vmatpush1.msra.mxu0 0.0
  %1316 = vmatprep.subr.mxu0 0.0
  %1317 = vmatpush1.msra.mxu0 0.0
  %1318 = vmatprep.subr.mxu0 0.0
  %1319 = vmatpush1.msra.mxu0 0.0
  %1320 = vmatprep.subr.mxu0 0.0
  %1321 = vmatpush1.msra.mxu0 0.0
  %1322 = vmatprep.subr.mxu0 0.0
  %1323 = vmatpush1.msra.mxu0 0.0
  %1324 = vmatprep.subr.mxu0 0.0
  %1325 = vmatpush1.msra.mxu0 0.0
  %1326 = vmatprep.subr.mxu0 0.0
  %1327 = vmatpush1.msra.mxu0 0.0
  %1328 = vmatprep.subr.mxu0 0.0
  %1329 = vmatpush1.msra.mxu0 0.0
  %1330 = vmatprep.subr.mxu0 0.0
  %1331 = vmatpush1.msra.mxu0 0.0
  %1332 = vmatprep.subr.mxu0 0.0
  %1333 = vmatpush1.msra.mxu0 0.0
  %1334 = vmatprep.subr.mxu0 0.0
  %1335 = vmatpush1.msra.mxu0 0.0
  %1336 = vmatprep.subr.mxu0 0.0
  %1337 = vmatpush1.msra.mxu0 0.0
  %1338 = vmatprep.subr.mxu0 0.0
  %1339 = vmatpush1.msra.mxu0 0.0
  %1340 = vmatprep.subr.mxu0 0.0
  %1341 = vmatpush1.msra.mxu0 0.0
  %1342 = vmatprep.subr.mxu0 0.0
  %1343 = vmatpush1.msra.mxu0 0.0
  %1344 = vmatprep.subr.mxu0 0.0
  %1345 = vmatpush1.msra.mxu0 0.0
  %1346 = vmatprep.subr.mxu0 0.0
  %1347 = vmatpush1.msra.mxu0 0.0
  %1348 = vmatprep.mubr.f32.mxu0 0.0
  %1349 = vmatmul.mubr.f32.gmra.mrb[0].mxu0 %v1237
  %v1350 = vpop.f32.mrb[0].mxu0
  %v1351 = vadd.f32 0.0, %v1350
  %v1352 = vpop.f32.mrb[0].mxu0
  %1353 = vmatprep.mubr.f32.mxu0 0.0
  %1354 = vmatmul.mubr.f32.gmra.mrb[0].mxu0 %v1240
  %v1355 = vpop.f32.mrb[0].mxu0
  %v1356 = vadd.f32 0.0, %v1355
  %v1357 = vpop.f32.mrb[0].mxu0
  %1358 = vmatprep.mubr.f32.mxu0 0.0
  %1359 = vmatmul.mubr.f32.gmra.mrb[0].mxu0 %v1243
  %v1360 = vpop.f32.mrb[0].mxu0
  %v1361 = vadd.f32 0.0, %v1360
  %v1362 = vpop.f32.mrb[0].mxu0
  %1363 = vmatprep.mubr.f32.mxu0 0.0
  %1364 = vmatmul.mubr.f32.gmra.mrb[0].mxu0 %v1246
  %v1365 = vpop.f32.mrb[0].mxu0
  %v1366 = vadd.f32 0.0, %v1365
  %v1367 = vpop.f32.mrb[0].mxu0
  %1368 = vmatprep.mubr.f32.mxu0 0.0
  %1369 = vmatmul.mubr.f32.gmra.mrb[0].mxu0 %v1249
  %v1370 = vpop.f32.mrb[0].mxu0
  %v1371 = vadd.f32 0.0, %v1370
  %v1372 = vpop.f32.mrb[0].mxu0
  %1373 = vmatprep.mubr.f32.mxu0 0.0
  %1374 = vmatmul.mubr.f32.gmra.mrb[0].mxu0 %v1252
  %v1375 = vpop.f32.mrb[0].mxu0
  %v1376 = vadd.f32 0.0, %v1375
  %v1377 = vpop.f32.mrb[0].mxu0
  %1378 = vmatprep.mubr.f32.mxu0 0.0
  %1379 = vmatmul.mubr.f32.gmra.mrb[0].mxu0 %v1255
  %v1380 = vpop.f32.mrb[0].mxu0
  %v1381 = vadd.f32 0.0, %v1380
  %v1382 = vpop.f32.mrb[0].mxu0
  %1383 = vmatprep.mubr.f32.mxu0 0.0
  %1384 = vmatmul.mubr.f32.gmra.mrb[0].mxu0 %v1258
  %v1385 = vpop.f32.mrb[0].mxu0
  %v1386 = vadd.f32 0.0, %v1385
  %v1387 = vpop.f32.mrb[0].mxu0
  %1388 = vmatprep.mubr.f32.mxu0 0.0
  %1389 = vmatmul.mubr.f32.gmra.mrb[0].mxu0 %v1261
  %v1390 = vpop.f32.mrb[0].mxu0
  %v1391 = vadd.f32 0.0, %v1390
  %v1392 = vpop.f32.mrb[0].mxu0
  %1393 = vmatprep.mubr.f32.mxu0 0.0
  %1394 = vmatmul.mubr.f32.gmra.mrb[0].mxu0 %v1264
  %v1395 = vpop.f32.mrb[0].mxu0
  %v1396 = vadd.f32 0.0, %v1395
  %v1397 = vpop.f32.mrb[0].mxu0
  %1398 = vmatprep.mubr.f32.mxu0 0.0
  %1399 = vmatmul.mubr.f32.gmra.mrb[0].mxu0 %v1267
  %v1400 = vpop.f32.mrb[0].mxu0
  %v1401 = vadd.f32 0.0, %v1400
  %v1402 = vpop.f32.mrb[0].mxu0
  %1403 = vmatprep.mubr.f32.mxu0 0.0
  %1404 = vmatmul.mubr.f32.gmra.mrb[0].mxu0 %v1270
  %v1405 = vpop.f32.mrb[0].mxu0
  %v1406 = vadd.f32 0.0, %v1405
  %v1407 = vpop.f32.mrb[0].mxu0
  %1408 = vmatprep.mubr.f32.mxu0 0.0
  %1409 = vmatmul.mubr.f32.gmra.mrb[0].mxu0 %v1273
  %v1410 = vpop.f32.mrb[0].mxu0
  %v1411 = vadd.f32 0.0, %v1410
  %v1412 = vpop.f32.mrb[0].mxu0
  %1413 = vmatprep.mubr.f32.mxu0 0.0
  %1414 = vmatmul.mubr.f32.gmra.mrb[0].mxu0 %v1276
  %v1415 = vpop.f32.mrb[0].mxu0
  %v1416 = vadd.f32 0.0, %v1415
  %v1417 = vpop.f32.mrb[0].mxu0
  %1418 = vmatprep.mubr.f32.mxu0 0.0
  %1419 = vmatmul.mubr.f32.gmra.mrb[0].mxu0 %v1279
  %v1420 = vpop.f32.mrb[0].mxu0
  %v1421 = vadd.f32 0.0, %v1420
  %v1422 = vpop.f32.mrb[0].mxu0
  %1423 = vmatprep.mubr.f32.mxu0 0.0
  %1424 = vmatmul.mubr.f32.gmra.mrb[0].mxu0 %v1282
  %v1425 = vpop.f32.mrb[0].mxu0
  %v1426 = vadd.f32 0.0, %v1425
  %v1427 = vpop.f32.mrb[0].mxu0
  %1428 = vdwg.mxu0
  %1429 = vxpose.xlu0.b32.start [1/16] %v752, 128
  %1430 = vxpose.xlu0.b32.cont [2/16] %v753, 128
  %1431 = vxpose.xlu0.b32.cont [3/16] 0.0, 128
  %1432 = vxpose.xlu0.b32.cont [4/16] 0.0, 128
  %1433 = vxpose.xlu0.b32.cont [5/16] 0.0, 128
  %1434 = vxpose.xlu0.b32.cont [6/16] 0.0, 128
  %1435 = vxpose.xlu0.b32.cont [7/16] 0.0, 128
  %1436 = vxpose.xlu0.b32.cont [8/16] 0.0, 128
  %1437 = vxpose.xlu0.b32.cont [9/16] 0.0, 128
  %1438 = vxpose.xlu0.b32.cont [10/16] 0.0, 128
  %1439 = vxpose.xlu0.b32.cont [11/16] 0.0, 128
  %1440 = vxpose.xlu0.b32.cont [12/16] 0.0, 128
  %1441 = vxpose.xlu0.b32.cont [13/16] 0.0, 128
  %1442 = vxpose.xlu0.b32.cont [14/16] 0.0, 128
  %1443 = vxpose.xlu0.b32.cont [15/16] 0.0, 128
  %1444 = vxpose.xlu0.b32.end [16/16] 0.0, 128
  %v1445 = vpop.trf.xlu0
  %v1446 = vpop.trf.xlu0
  %v1447 = vpop.trf.xlu0
  %v1448 = vpop.trf.xlu0
  %v1449 = vpop.trf.xlu0
  %v1450 = vpop.trf.xlu0
  %v1451 = vpop.trf.xlu0
  %v1452 = vpop.trf.xlu0
  %v1453 = vpop.trf.xlu0
  %v1454 = vpop.trf.xlu0
  %v1455 = vpop.trf.xlu0
  %v1456 = vpop.trf.xlu0
  %v1457 = vpop.trf.xlu0
  %v1458 = vpop.trf.xlu0
  %v1459 = vpop.trf.xlu0
  %v1460 = vpop.trf.xlu0
  %v1462 = vsel %vm153, %v1445, 0
  %v1465 = vsel %vm153, %v1446, 0
  %v1468 = vsel %vm153, %v1447, 0
  %v1471 = vsel %vm153, %v1448, 0
  %v1474 = vsel %vm153, %v1449, 0
  %v1477 = vsel %vm153, %v1450, 0
  %v1480 = vsel %vm153, %v1451, 0
  %v1483 = vsel %vm153, %v1452, 0
  %v1486 = vsel %vm153, %v1453, 0
  %v1489 = vsel %vm153, %v1454, 0
  %v1492 = vsel %vm153, %v1455, 0
  %v1495 = vsel %vm153, %v1456, 0
  %v1498 = vsel %vm153, %v1457, 0
  %v1501 = vsel %vm153, %v1458, 0
  %v1504 = vsel %vm153, %v1459, 0
  %v1507 = vsel %vm153, %v1460, 0
  %1509 = vmatprep.subr.mxu0 0.0
  %1510 = vmatpush1.msra.mxu0 %v509
  %1511 = vmatprep.subr.mxu0 0.0
  %1512 = vmatpush1.msra.mxu0 %v510
  %1513 = vmatprep.subr.mxu0 0.0
  %1514 = vmatpush1.msra.mxu0 0.0
  %1515 = vmatprep.subr.mxu0 0.0
  %1516 = vmatpush1.msra.mxu0 0.0
  %1517 = vmatprep.subr.mxu0 0.0
  %1518 = vmatpush1.msra.mxu0 0.0
  %1519 = vmatprep.subr.mxu0 0.0
  %1520 = vmatpush1.msra.mxu0 0.0
  %1521 = vmatprep.subr.mxu0 0.0
  %1522 = vmatpush1.msra.mxu0 0.0
  %1523 = vmatprep.subr.mxu0 0.0
  %1524 = vmatpush1.msra.mxu0 0.0
  %1525 = vmatprep.subr.mxu0 0.0
  %1526 = vmatpush1.msra.mxu0 0.0
  %1527 = vmatprep.subr.mxu0 0.0
  %1528 = vmatpush1.msra.mxu0 0.0
  %1529 = vmatprep.subr.mxu0 0.0
  %1530 = vmatpush1.msra.mxu0 0.0
  %1531 = vmatprep.subr.mxu0 0.0
  %1532 = vmatpush1.msra.mxu0 0.0
  %1533 = vmatprep.subr.mxu0 0.0
  %1534 = vmatpush1.msra.mxu0 0.0
  %1535 = vmatprep.subr.mxu0 0.0
  %1536 = vmatpush1.msra.mxu0 0.0
  %1537 = vmatprep.subr.mxu0 0.0
  %1538 = vmatpush1.msra.mxu0 0.0
  %1539 = vmatprep.subr.mxu0 0.0
  %1540 = vmatpush1.msra.mxu0 0.0
  %1541 = vmatprep.subr.mxu0 0.0
  %1542 = vmatpush1.msra.mxu0 0.0
  %1543 = vmatprep.subr.mxu0 0.0
  %1544 = vmatpush1.msra.mxu0 0.0
  %1545 = vmatprep.subr.mxu0 0.0
  %1546 = vmatpush1.msra.mxu0 0.0
  %1547 = vmatprep.subr.mxu0 0.0
  %1548 = vmatpush1.msra.mxu0 0.0
  %1549 = vmatprep.subr.mxu0 0.0
  %1550 = vmatpush1.msra.mxu0 0.0
  %1551 = vmatprep.subr.mxu0 0.0
  %1552 = vmatpush1.msra.mxu0 0.0
  %1553 = vmatprep.subr.mxu0 0.0
  %1554 = vmatpush1.msra.mxu0 0.0
  %1555 = vmatprep.subr.mxu0 0.0
  %1556 = vmatpush1.msra.mxu0 0.0
  %1557 = vmatprep.subr.mxu0 0.0
  %1558 = vmatpush1.msra.mxu0 0.0
  %1559 = vmatprep.subr.mxu0 0.0
  %1560 = vmatpush1.msra.mxu0 0.0
  %1561 = vmatprep.subr.mxu0 0.0
  %1562 = vmatpush1.msra.mxu0 0.0
  %1563 = vmatprep.subr.mxu0 0.0
  %1564 = vmatpush1.msra.mxu0 0.0
  %1565 = vmatprep.subr.mxu0 0.0
  %1566 = vmatpush1.msra.mxu0 0.0
  %1567 = vmatprep.subr.mxu0 0.0
  %1568 = vmatpush1.msra.mxu0 0.0
  %1569 = vmatprep.subr.mxu0 0.0
  %1570 = vmatpush1.msra.mxu0 0.0
  %1571 = vmatprep.subr.mxu0 0.0
  %1572 = vmatpush1.msra.mxu0 0.0
  %1573 = vmatprep.mubr.f32.mxu0 0.0
  %1574 = vmatmul.mubr.f32.gmra.mrb[0].mxu0 %v1462
  %v1575 = vpop.f32.mrb[0].mxu0
  %v1576 = vadd.f32 0.0, %v1575
  %v1577 = vpop.f32.mrb[0].mxu0
  %1578 = vmatprep.mubr.f32.mxu0 0.0
  %1579 = vmatmul.mubr.f32.gmra.mrb[0].mxu0 %v1465
  %v1580 = vpop.f32.mrb[0].mxu0
  %v1581 = vadd.f32 0.0, %v1580
  %v1582 = vpop.f32.mrb[0].mxu0
  %1583 = vmatprep.mubr.f32.mxu0 0.0
  %1584 = vmatmul.mubr.f32.gmra.mrb[0].mxu0 %v1468
  %v1585 = vpop.f32.mrb[0].mxu0
  %v1586 = vadd.f32 0.0, %v1585
  %v1587 = vpop.f32.mrb[0].mxu0
  %1588 = vmatprep.mubr.f32.mxu0 0.0
  %1589 = vmatmul.mubr.f32.gmra.mrb[0].mxu0 %v1471
  %v1590 = vpop.f32.mrb[0].mxu0
  %v1591 = vadd.f32 0.0, %v1590
  %v1592 = vpop.f32.mrb[0].mxu0
  %1593 = vmatprep.mubr.f32.mxu0 0.0
  %1594 = vmatmul.mubr.f32.gmra.mrb[0].mxu0 %v1474
  %v1595 = vpop.f32.mrb[0].mxu0
  %v1596 = vadd.f32 0.0, %v1595
  %v1597 = vpop.f32.mrb[0].mxu0
  %1598 = vmatprep.mubr.f32.mxu0 0.0
  %1599 = vmatmul.mubr.f32.gmra.mrb[0].mxu0 %v1477
  %v1600 = vpop.f32.mrb[0].mxu0
  %v1601 = vadd.f32 0.0, %v1600
  %v1602 = vpop.f32.mrb[0].mxu0
  %1603 = vmatprep.mubr.f32.mxu0 0.0
  %1604 = vmatmul.mubr.f32.gmra.mrb[0].mxu0 %v1480
  %v1605 = vpop.f32.mrb[0].mxu0
  %v1606 = vadd.f32 0.0, %v1605
  %v1607 = vpop.f32.mrb[0].mxu0
  %1608 = vmatprep.mubr.f32.mxu0 0.0
  %1609 = vmatmul.mubr.f32.gmra.mrb[0].mxu0 %v1483
  %v1610 = vpop.f32.mrb[0].mxu0
  %v1611 = vadd.f32 0.0, %v1610
  %v1612 = vpop.f32.mrb[0].mxu0
  %1613 = vmatprep.mubr.f32.mxu0 0.0
  %1614 = vmatmul.mubr.f32.gmra.mrb[0].mxu0 %v1486
  %v1615 = vpop.f32.mrb[0].mxu0
  %v1616 = vadd.f32 0.0, %v1615
  %v1617 = vpop.f32.mrb[0].mxu0
  %1618 = vmatprep.mubr.f32.mxu0 0.0
  %1619 = vmatmul.mubr.f32.gmra.mrb[0].mxu0 %v1489
  %v1620 = vpop.f32.mrb[0].mxu0
  %v1621 = vadd.f32 0.0, %v1620
  %v1622 = vpop.f32.mrb[0].mxu0
  %1623 = vmatprep.mubr.f32.mxu0 0.0
  %1624 = vmatmul.mubr.f32.gmra.mrb[0].mxu0 %v1492
  %v1625 = vpop.f32.mrb[0].mxu0
  %v1626 = vadd.f32 0.0, %v1625
  %v1627 = vpop.f32.mrb[0].mxu0
  %1628 = vmatprep.mubr.f32.mxu0 0.0
  %1629 = vmatmul.mubr.f32.gmra.mrb[0].mxu0 %v1495
  %v1630 = vpop.f32.mrb[0].mxu0
  %v1631 = vadd.f32 0.0, %v1630
  %v1632 = vpop.f32.mrb[0].mxu0
  %1633 = vmatprep.mubr.f32.mxu0 0.0
  %1634 = vmatmul.mubr.f32.gmra.mrb[0].mxu0 %v1498
  %v1635 = vpop.f32.mrb[0].mxu0
  %v1636 = vadd.f32 0.0, %v1635
  %v1637 = vpop.f32.mrb[0].mxu0
  %1638 = vmatprep.mubr.f32.mxu0 0.0
  %1639 = vmatmul.mubr.f32.gmra.mrb[0].mxu0 %v1501
  %v1640 = vpop.f32.mrb[0].mxu0
  %v1641 = vadd.f32 0.0, %v1640
  %v1642 = vpop.f32.mrb[0].mxu0
  %1643 = vmatprep.mubr.f32.mxu0 0.0
  %1644 = vmatmul.mubr.f32.gmra.mrb[0].mxu0 %v1504
  %v1645 = vpop.f32.mrb[0].mxu0
  %v1646 = vadd.f32 0.0, %v1645
  %v1647 = vpop.f32.mrb[0].mxu0
  %1648 = vmatprep.mubr.f32.mxu0 0.0
  %1649 = vmatmul.mubr.f32.gmra.mrb[0].mxu0 %v1507
  %v1650 = vpop.f32.mrb[0].mxu0
  %v1651 = vadd.f32 0.0, %v1650
  %v1652 = vpop.f32.mrb[0].mxu0
  %1653 = vdwg.mxu0
  %v1654 = vmul.f32 %v901, %v617
  %v1655 = vmul.f32 %v906, %v618
  %v1656 = vmul.f32 %v911, %v619
  %v1657 = vmul.f32 %v916, %v620
  %v1658 = vmul.f32 %v921, %v621
  %v1659 = vmul.f32 %v926, %v622
  %v1660 = vmul.f32 %v931, %v623
  %v1661 = vmul.f32 %v936, %v624
  %v1662 = vmul.f32 %v941, %v625
  %v1663 = vmul.f32 %v946, %v626
  %v1664 = vmul.f32 %v951, %v627
  %v1665 = vmul.f32 %v956, %v628
  %v1666 = vmul.f32 %v961, %v629
  %v1667 = vmul.f32 %v966, %v630
  %v1668 = vmul.f32 %v971, %v631
  %v1669 = vmul.f32 %v976, %v632
  %v1670 = vmul.f32 %v1126, %v617
  %v1671 = vmul.f32 %v1131, %v618
  %v1672 = vmul.f32 %v1136, %v619
  %v1673 = vmul.f32 %v1141, %v620
  %v1674 = vmul.f32 %v1146, %v621
  %v1675 = vmul.f32 %v1151, %v622
  %v1676 = vmul.f32 %v1156, %v623
  %v1677 = vmul.f32 %v1161, %v624
  %v1678 = vmul.f32 %v1166, %v625
  %v1679 = vmul.f32 %v1171, %v626
  %v1680 = vmul.f32 %v1176, %v627
  %v1681 = vmul.f32 %v1181, %v628
  %v1682 = vmul.f32 %v1186, %v629
  %v1683 = vmul.f32 %v1191, %v630
  %v1684 = vmul.f32 %v1196, %v631
  %v1685 = vmul.f32 %v1201, %v632
  %v1686 = vmul.f32 %v1351, %v617
  %v1687 = vmul.f32 %v1356, %v618
  %v1688 = vmul.f32 %v1361, %v619
  %v1689 = vmul.f32 %v1366, %v620
  %v1690 = vmul.f32 %v1371, %v621
  %v1691 = vmul.f32 %v1376, %v622
  %v1692 = vmul.f32 %v1381, %v623
  %v1693 = vmul.f32 %v1386, %v624
  %v1694 = vmul.f32 %v1391, %v625
  %v1695 = vmul.f32 %v1396, %v626
  %v1696 = vmul.f32 %v1401, %v627
  %v1697 = vmul.f32 %v1406, %v628
  %v1698 = vmul.f32 %v1411, %v629
  %v1699 = vmul.f32 %v1416, %v630
  %v1700 = vmul.f32 %v1421, %v631
  %v1701 = vmul.f32 %v1426, %v632
  %v1702 = vmul.f32 %v1576, %v617
  %v1703 = vmul.f32 %v1581, %v618
  %v1704 = vmul.f32 %v1586, %v619
  %v1705 = vmul.f32 %v1591, %v620
  %v1706 = vmul.f32 %v1596, %v621
  %v1707 = vmul.f32 %v1601, %v622
  %v1708 = vmul.f32 %v1606, %v623
  %v1709 = vmul.f32 %v1611, %v624
  %v1710 = vmul.f32 %v1616, %v625
  %v1711 = vmul.f32 %v1621, %v626
  %v1712 = vmul.f32 %v1626, %v627
  %v1713 = vmul.f32 %v1631, %v628
  %v1714 = vmul.f32 %v1636, %v629
  %v1715 = vmul.f32 %v1641, %v630
  %v1716 = vmul.f32 %v1646, %v631
  %v1717 = vmul.f32 %v1651, %v632
  %1718 = vmatprep.subr.mxu0 0.0
  %1719 = vmatpush1.msra.mxu0 %v1654
  %1720 = vmatprep.subr.mxu0 0.0
  %1721 = vmatpush1.msra.mxu0 %v1655
  %1722 = vmatprep.subr.mxu0 0.0
  %1723 = vmatpush1.msra.mxu0 %v1656
  %1724 = vmatprep.subr.mxu0 0.0
  %1725 = vmatpush1.msra.mxu0 %v1657
  %1726 = vmatprep.subr.mxu0 0.0
  %1727 = vmatpush1.msra.mxu0 %v1658
  %1728 = vmatprep.subr.mxu0 0.0
  %1729 = vmatpush1.msra.mxu0 %v1659
  %1730 = vmatprep.subr.mxu0 0.0
  %1731 = vmatpush1.msra.mxu0 %v1660
  %1732 = vmatprep.subr.mxu0 0.0
  %1733 = vmatpush1.msra.mxu0 %v1661
  %1734 = vmatprep.subr.mxu0 0.0
  %1735 = vmatpush1.msra.mxu0 %v1662
  %1736 = vmatprep.subr.mxu0 0.0
  %1737 = vmatpush1.msra.mxu0 %v1663
  %1738 = vmatprep.subr.mxu0 0.0
  %1739 = vmatpush1.msra.mxu0 %v1664
  %1740 = vmatprep.subr.mxu0 0.0
  %1741 = vmatpush1.msra.mxu0 %v1665
  %1742 = vmatprep.subr.mxu0 0.0
  %1743 = vmatpush1.msra.mxu0 %v1666
  %1744 = vmatprep.subr.mxu0 0.0
  %1745 = vmatpush1.msra.mxu0 %v1667
  %1746 = vmatprep.subr.mxu0 0.0
  %1747 = vmatpush1.msra.mxu0 %v1668
  %1748 = vmatprep.subr.mxu0 0.0
  %1749 = vmatpush1.msra.mxu0 %v1669
  %1750 = vmatprep.subr.mxu0 0.0
  %1751 = vmatpush1.msra.mxu0 0.0
  %1752 = vmatprep.subr.mxu0 0.0
  %1753 = vmatpush1.msra.mxu0 0.0
  %1754 = vmatprep.subr.mxu0 0.0
  %1755 = vmatpush1.msra.mxu0 0.0
  %1756 = vmatprep.subr.mxu0 0.0
  %1757 = vmatpush1.msra.mxu0 0.0
  %1758 = vmatprep.subr.mxu0 0.0
  %1759 = vmatpush1.msra.mxu0 0.0
  %1760 = vmatprep.subr.mxu0 0.0
  %1761 = vmatpush1.msra.mxu0 0.0
  %1762 = vmatprep.subr.mxu0 0.0
  %1763 = vmatpush1.msra.mxu0 0.0
  %1764 = vmatprep.subr.mxu0 0.0
  %1765 = vmatpush1.msra.mxu0 0.0
  %1766 = vmatprep.subr.mxu0 0.0
  %1767 = vmatpush1.msra.mxu0 0.0
  %1768 = vmatprep.subr.mxu0 0.0
  %1769 = vmatpush1.msra.mxu0 0.0
  %1770 = vmatprep.subr.mxu0 0.0
  %1771 = vmatpush1.msra.mxu0 0.0
  %1772 = vmatprep.subr.mxu0 0.0
  %1773 = vmatpush1.msra.mxu0 0.0
  %1774 = vmatprep.subr.mxu0 0.0
  %1775 = vmatpush1.msra.mxu0 0.0
  %1776 = vmatprep.subr.mxu0 0.0
  %1777 = vmatpush1.msra.mxu0 0.0
  %1778 = vmatprep.subr.mxu0 0.0
  %1779 = vmatpush1.msra.mxu0 0.0
  %1780 = vmatprep.subr.mxu0 0.0
  %1781 = vmatpush1.msra.mxu0 0.0
  %1782 = vmatprep.mubr.f32.mxu0 0.0
  %1783 = vmatmul.mubr.f32.gmra.mrb[0].mxu0 %v373
  %v1784 = vpop.f32.mrb[0].mxu0
  %v1785 = vadd.f32 0.0, %v1784
  %v1786 = vpop.f32.mrb[0].mxu0
  %1787 = vmatprep.mubr.f32.mxu0 0.0
  %1788 = vmatmul.mubr.f32.gmra.mrb[0].mxu0 %v378
  %v1789 = vpop.f32.mrb[0].mxu0
  %v1790 = vadd.f32 0.0, %v1789
  %v1791 = vpop.f32.mrb[0].mxu0
  %1792 = vdwg.mxu0
  %1793 = vmatprep.subr.mxu0 0.0
  %1794 = vmatpush1.msra.mxu0 %v1670
  %1795 = vmatprep.subr.mxu0 0.0
  %1796 = vmatpush1.msra.mxu0 %v1671
  %1797 = vmatprep.subr.mxu0 0.0
  %1798 = vmatpush1.msra.mxu0 %v1672
  %1799 = vmatprep.subr.mxu0 0.0
  %1800 = vmatpush1.msra.mxu0 %v1673
  %1801 = vmatprep.subr.mxu0 0.0
  %1802 = vmatpush1.msra.mxu0 %v1674
  %1803 = vmatprep.subr.mxu0 0.0
  %1804 = vmatpush1.msra.mxu0 %v1675
  %1805 = vmatprep.subr.mxu0 0.0
  %1806 = vmatpush1.msra.mxu0 %v1676
  %1807 = vmatprep.subr.mxu0 0.0
  %1808 = vmatpush1.msra.mxu0 %v1677
  %1809 = vmatprep.subr.mxu0 0.0
  %1810 = vmatpush1.msra.mxu0 %v1678
  %1811 = vmatprep.subr.mxu0 0.0
  %1812 = vmatpush1.msra.mxu0 %v1679
  %1813 = vmatprep.subr.mxu0 0.0
  %1814 = vmatpush1.msra.mxu0 %v1680
  %1815 = vmatprep.subr.mxu0 0.0
  %1816 = vmatpush1.msra.mxu0 %v1681
  %1817 = vmatprep.subr.mxu0 0.0
  %1818 = vmatpush1.msra.mxu0 %v1682
  %1819 = vmatprep.subr.mxu0 0.0
  %1820 = vmatpush1.msra.mxu0 %v1683
  %1821 = vmatprep.subr.mxu0 0.0
  %1822 = vmatpush1.msra.mxu0 %v1684
  %1823 = vmatprep.subr.mxu0 0.0
  %1824 = vmatpush1.msra.mxu0 %v1685
  %1825 = vmatprep.subr.mxu0 0.0
  %1826 = vmatpush1.msra.mxu0 0.0
  %1827 = vmatprep.subr.mxu0 0.0
  %1828 = vmatpush1.msra.mxu0 0.0
  %1829 = vmatprep.subr.mxu0 0.0
  %1830 = vmatpush1.msra.mxu0 0.0
  %1831 = vmatprep.subr.mxu0 0.0
  %1832 = vmatpush1.msra.mxu0 0.0
  %1833 = vmatprep.subr.mxu0 0.0
  %1834 = vmatpush1.msra.mxu0 0.0
  %1835 = vmatprep.subr.mxu0 0.0
  %1836 = vmatpush1.msra.mxu0 0.0
  %1837 = vmatprep.subr.mxu0 0.0
  %1838 = vmatpush1.msra.mxu0 0.0
  %1839 = vmatprep.subr.mxu0 0.0
  %1840 = vmatpush1.msra.mxu0 0.0
  %1841 = vmatprep.subr.mxu0 0.0
  %1842 = vmatpush1.msra.mxu0 0.0
  %1843 = vmatprep.subr.mxu0 0.0
  %1844 = vmatpush1.msra.mxu0 0.0
  %1845 = vmatprep.subr.mxu0 0.0
  %1846 = vmatpush1.msra.mxu0 0.0
  %1847 = vmatprep.subr.mxu0 0.0
  %1848 = vmatpush1.msra.mxu0 0.0
  %1849 = vmatprep.subr.mxu0 0.0
  %1850 = vmatpush1.msra.mxu0 0.0
  %1851 = vmatprep.subr.mxu0 0.0
  %1852 = vmatpush1.msra.mxu0 0.0
  %1853 = vmatprep.subr.mxu0 0.0
  %1854 = vmatpush1.msra.mxu0 0.0
  %1855 = vmatprep.subr.mxu0 0.0
  %1856 = vmatpush1.msra.mxu0 0.0
  %1857 = vmatprep.mubr.f32.mxu0 0.0
  %1858 = vmatmul.mubr.f32.gmra.mrb[0].mxu0 %v383
  %v1859 = vpop.f32.mrb[0].mxu0
  %v1860 = vadd.f32 0.0, %v1859
  %v1861 = vpop.f32.mrb[0].mxu0
  %1862 = vmatprep.mubr.f32.mxu0 0.0
  %1863 = vmatmul.mubr.f32.gmra.mrb[0].mxu0 %v388
  %v1864 = vpop.f32.mrb[0].mxu0
  %v1865 = vadd.f32 0.0, %v1864
  %v1866 = vpop.f32.mrb[0].mxu0
  %1867 = vdwg.mxu0
  %1868 = vmatprep.subr.mxu0 0.0
  %1869 = vmatpush1.msra.mxu0 %v1686
  %1870 = vmatprep.subr.mxu0 0.0
  %1871 = vmatpush1.msra.mxu0 %v1687
  %1872 = vmatprep.subr.mxu0 0.0
  %1873 = vmatpush1.msra.mxu0 %v1688
  %1874 = vmatprep.subr.mxu0 0.0
  %1875 = vmatpush1.msra.mxu0 %v1689
  %1876 = vmatprep.subr.mxu0 0.0
  %1877 = vmatpush1.msra.mxu0 %v1690
  %1878 = vmatprep.subr.mxu0 0.0
  %1879 = vmatpush1.msra.mxu0 %v1691
  %1880 = vmatprep.subr.mxu0 0.0
  %1881 = vmatpush1.msra.mxu0 %v1692
  %1882 = vmatprep.subr.mxu0 0.0
  %1883 = vmatpush1.msra.mxu0 %v1693
  %1884 = vmatprep.subr.mxu0 0.0
  %1885 = vmatpush1.msra.mxu0 %v1694
  %1886 = vmatprep.subr.mxu0 0.0
  %1887 = vmatpush1.msra.mxu0 %v1695
  %1888 = vmatprep.subr.mxu0 0.0
  %1889 = vmatpush1.msra.mxu0 %v1696
  %1890 = vmatprep.subr.mxu0 0.0
  %1891 = vmatpush1.msra.mxu0 %v1697
  %1892 = vmatprep.subr.mxu0 0.0
  %1893 = vmatpush1.msra.mxu0 %v1698
  %1894 = vmatprep.subr.mxu0 0.0
  %1895 = vmatpush1.msra.mxu0 %v1699
  %1896 = vmatprep.subr.mxu0 0.0
  %1897 = vmatpush1.msra.mxu0 %v1700
  %1898 = vmatprep.subr.mxu0 0.0
  %1899 = vmatpush1.msra.mxu0 %v1701
  %1900 = vmatprep.subr.mxu0 0.0
  %1901 = vmatpush1.msra.mxu0 0.0
  %1902 = vmatprep.subr.mxu0 0.0
  %1903 = vmatpush1.msra.mxu0 0.0
  %1904 = vmatprep.subr.mxu0 0.0
  %1905 = vmatpush1.msra.mxu0 0.0
  %1906 = vmatprep.subr.mxu0 0.0
  %1907 = vmatpush1.msra.mxu0 0.0
  %1908 = vmatprep.subr.mxu0 0.0
  %1909 = vmatpush1.msra.mxu0 0.0
  %1910 = vmatprep.subr.mxu0 0.0
  %1911 = vmatpush1.msra.mxu0 0.0
  %1912 = vmatprep.subr.mxu0 0.0
  %1913 = vmatpush1.msra.mxu0 0.0
  %1914 = vmatprep.subr.mxu0 0.0
  %1915 = vmatpush1.msra.mxu0 0.0
  %1916 = vmatprep.subr.mxu0 0.0
  %1917 = vmatpush1.msra.mxu0 0.0
  %1918 = vmatprep.subr.mxu0 0.0
  %1919 = vmatpush1.msra.mxu0 0.0
  %1920 = vmatprep.subr.mxu0 0.0
  %1921 = vmatpush1.msra.mxu0 0.0
  %1922 = vmatprep.subr.mxu0 0.0
  %1923 = vmatpush1.msra.mxu0 0.0
  %1924 = vmatprep.subr.mxu0 0.0
  %1925 = vmatpush1.msra.mxu0 0.0
  %1926 = vmatprep.subr.mxu0 0.0
  %1927 = vmatpush1.msra.mxu0 0.0
  %1928 = vmatprep.subr.mxu0 0.0
  %1929 = vmatpush1.msra.mxu0 0.0
  %1930 = vmatprep.subr.mxu0 0.0
  %1931 = vmatpush1.msra.mxu0 0.0
  %1932 = vmatprep.mubr.f32.mxu0 0.0
  %1933 = vmatmul.mubr.f32.gmra.mrb[0].mxu0 %v393
  %v1934 = vpop.f32.mrb[0].mxu0
  %v1935 = vadd.f32 0.0, %v1934
  %v1936 = vpop.f32.mrb[0].mxu0
  %1937 = vmatprep.mubr.f32.mxu0 0.0
  %1938 = vmatmul.mubr.f32.gmra.mrb[0].mxu0 %v398
  %v1939 = vpop.f32.mrb[0].mxu0
  %v1940 = vadd.f32 0.0, %v1939
  %v1941 = vpop.f32.mrb[0].mxu0
  %1942 = vdwg.mxu0
  %1943 = vmatprep.subr.mxu0 0.0
  %1944 = vmatpush1.msra.mxu0 %v1702
  %1945 = vmatprep.subr.mxu0 0.0
  %1946 = vmatpush1.msra.mxu0 %v1703
  %1947 = vmatprep.subr.mxu0 0.0
  %1948 = vmatpush1.msra.mxu0 %v1704
  %1949 = vmatprep.subr.mxu0 0.0
  %1950 = vmatpush1.msra.mxu0 %v1705
  %1951 = vmatprep.subr.mxu0 0.0
  %1952 = vmatpush1.msra.mxu0 %v1706
  %1953 = vmatprep.subr.mxu0 0.0
  %1954 = vmatpush1.msra.mxu0 %v1707
  %1955 = vmatprep.subr.mxu0 0.0
  %1956 = vmatpush1.msra.mxu0 %v1708
  %1957 = vmatprep.subr.mxu0 0.0
  %1958 = vmatpush1.msra.mxu0 %v1709
  %1959 = vmatprep.subr.mxu0 0.0
  %1960 = vmatpush1.msra.mxu0 %v1710
  %1961 = vmatprep.subr.mxu0 0.0
  %1962 = vmatpush1.msra.mxu0 %v1711
  %1963 = vmatprep.subr.mxu0 0.0
  %1964 = vmatpush1.msra.mxu0 %v1712
  %1965 = vmatprep.subr.mxu0 0.0
  %1966 = vmatpush1.msra.mxu0 %v1713
  %1967 = vmatprep.subr.mxu0 0.0
  %1968 = vmatpush1.msra.mxu0 %v1714
  %1969 = vmatprep.subr.mxu0 0.0
  %1970 = vmatpush1.msra.mxu0 %v1715
  %1971 = vmatprep.subr.mxu0 0.0
  %1972 = vmatpush1.msra.mxu0 %v1716
  %1973 = vmatprep.subr.mxu0 0.0
  %1974 = vmatpush1.msra.mxu0 %v1717
  %1975 = vmatprep.subr.mxu0 0.0
  %1976 = vmatpush1.msra.mxu0 0.0
  %1977 = vmatprep.subr.mxu0 0.0
  %1978 = vmatpush1.msra.mxu0 0.0
  %1979 = vmatprep.subr.mxu0 0.0
  %1980 = vmatpush1.msra.mxu0 0.0
  %1981 = vmatprep.subr.mxu0 0.0
  %1982 = vmatpush1.msra.mxu0 0.0
  %1983 = vmatprep.subr.mxu0 0.0
  %1984 = vmatpush1.msra.mxu0 0.0
  %1985 = vmatprep.subr.mxu0 0.0
  %1986 = vmatpush1.msra.mxu0 0.0
  %1987 = vmatprep.subr.mxu0 0.0
  %1988 = vmatpush1.msra.mxu0 0.0
  %1989 = vmatprep.subr.mxu0 0.0
  %1990 = vmatpush1.msra.mxu0 0.0
  %1991 = vmatprep.subr.mxu0 0.0
  %1992 = vmatpush1.msra.mxu0 0.0
  %1993 = vmatprep.subr.mxu0 0.0
  %1994 = vmatpush1.msra.mxu0 0.0
  %1995 = vmatprep.subr.mxu0 0.0
  %1996 = vmatpush1.msra.mxu0 0.0
  %1997 = vmatprep.subr.mxu0 0.0
  %1998 = vmatpush1.msra.mxu0 0.0
  %1999 = vmatprep.subr.mxu0 0.0
  %2000 = vmatpush1.msra.mxu0 0.0
  %2001 = vmatprep.subr.mxu0 0.0
  %2002 = vmatpush1.msra.mxu0 0.0
  %2003 = vmatprep.subr.mxu0 0.0
  %2004 = vmatpush1.msra.mxu0 0.0
  %2005 = vmatprep.subr.mxu0 0.0
  %2006 = vmatpush1.msra.mxu0 0.0
  %2007 = vmatprep.mubr.f32.mxu0 0.0
  %2008 = vmatmul.mubr.f32.gmra.mrb[0].mxu0 %v403
  %v2009 = vpop.f32.mrb[0].mxu0
  %v2010 = vadd.f32 0.0, %v2009
  %v2011 = vpop.f32.mrb[0].mxu0
  %2012 = vmatprep.mubr.f32.mxu0 0.0
  %2013 = vmatmul.mubr.f32.gmra.mrb[0].mxu0 %v408
  %v2014 = vpop.f32.mrb[0].mxu0
  %v2015 = vadd.f32 0.0, %v2014
  %v2016 = vpop.f32.mrb[0].mxu0
  %2017 = vdwg.mxu0
  %v2018 = vmul.f32 %v1785, 0.5
  %v2019 = vmul.f32 %v1790, 0.5
  %v2020 = vmul.f32 %v1860, 0.5
  %v2021 = vmul.f32 %v1865, 0.5
  %v2022 = vmul.f32 %v1935, 0.5
  %v2023 = vmul.f32 %v1940, 0.5
  %v2024 = vmul.f32 %v2010, 0.5
  %v2025 = vmul.f32 %v2015, 0.5
  %v2026 = vmul.f32 %v1785, %v1785
  %v2027 = vmul.f32 %v1790, %v1790
  %v2028 = vmul.f32 %v1860, %v1860
  %v2029 = vmul.f32 %v1865, %v1865
  %v2030 = vmul.f32 %v1935, %v1935
  %v2031 = vmul.f32 %v1940, %v1940
  %v2032 = vmul.f32 %v2010, %v2010
  %v2033 = vmul.f32 %v2015, %v2015
  %v2034 = vmul.f32 %v2026, %v1785
  %v2035 = vmul.f32 %v2027, %v1790
  %v2036 = vmul.f32 %v2028, %v1860
  %v2037 = vmul.f32 %v2029, %v1865
  %v2038 = vmul.f32 %v2030, %v1935
  %v2039 = vmul.f32 %v2031, %v1940
  %v2040 = vmul.f32 %v2032, %v2010
  %v2041 = vmul.f32 %v2033, %v2015
  %v2042 = vmul.f32 %v2034, 0.044715
  %v2043 = vmul.f32 %v2035, 0.044715
  %v2044 = vmul.f32 %v2036, 0.044715
  %v2045 = vmul.f32 %v2037, 0.044715
  %v2046 = vmul.f32 %v2038, 0.044715
  %v2047 = vmul.f32 %v2039, 0.044715
  %v2048 = vmul.f32 %v2040, 0.044715
  %v2049 = vmul.f32 %v2041, 0.044715
  %v2050 = vadd.f32 %v1785, %v2042
  %v2051 = vadd.f32 %v1790, %v2043
  %v2052 = vadd.f32 %v1860, %v2044
  %v2053 = vadd.f32 %v1865, %v2045
  %v2054 = vadd.f32 %v1935, %v2046
  %v2055 = vadd.f32 %v1940, %v2047
  %v2056 = vadd.f32 %v2010, %v2048
  %v2057 = vadd.f32 %v2015, %v2049
  %v2058 = vmul.f32 %v2050, 0.7978846
  %v2059 = vmul.f32 %v2051, 0.7978846
  %v2060 = vmul.f32 %v2052, 0.7978846
  %v2061 = vmul.f32 %v2053, 0.7978846
  %v2062 = vmul.f32 %v2054, 0.7978846
  %v2063 = vmul.f32 %v2055, 0.7978846
  %v2064 = vmul.f32 %v2056, 0.7978846
  %v2065 = vmul.f32 %v2057, 0.7978846
  %v2066 = vtanh.pop %v2058
  %v2067 = vtanh.pop %v2059
  %v2068 = vtanh.pop %v2060
  %v2069 = vtanh.pop %v2061
  %v2070 = vtanh.pop %v2062
  %v2071 = vtanh.pop %v2063
  %v2072 = vtanh.pop %v2064
  %v2073 = vtanh.pop %v2065
  %v2074 = vadd.f32 %v2066, 1.0
  %v2075 = vadd.f32 %v2067, 1.0
  %v2076 = vadd.f32 %v2068, 1.0
  %v2077 = vadd.f32 %v2069, 1.0
  %v2078 = vadd.f32 %v2070, 1.0
  %v2079 = vadd.f32 %v2071, 1.0
  %v2080 = vadd.f32 %v2072, 1.0
  %v2081 = vadd.f32 %v2073, 1.0
  %v2082 = vmul.f32 %v2018, %v2074
  %v2083 = vmul.f32 %v2019, %v2075
  %v2084 = vmul.f32 %v2020, %v2076
  %v2085 = vmul.f32 %v2021, %v2077
  %v2086 = vmul.f32 %v2022, %v2078
  %v2087 = vmul.f32 %v2023, %v2079
  %v2088 = vmul.f32 %v2024, %v2080
  %v2089 = vmul.f32 %v2025, %v2081
  %v2090 = vld [vmem:[%s3] sm:$0xff]
  %v2091 = vld [vmem:[%s4] sm:$0xff]
  %2093 = vset.pattern.permute.xlu0 0
  %2094 = vperm.xlu0 %2093, %v2091
  %v2095 = vpop.permute.xlu0 %2094
  %vm2097 = vcmask 523264
  %v2099 = vsel %vm2097, %v2090, 0
  %2101 = vmatprep.subr.mxu0 0.0
  %2102 = vmatpush1.msra.mxu0 %v2082
  %2103 = vmatprep.subr.mxu0 0.0
  %2104 = vmatpush1.msra.mxu0 %v2083
  %2105 = vmatprep.subr.mxu0 0.0
  %2106 = vmatpush1.msra.mxu0 %v2084
  %2107 = vmatprep.subr.mxu0 0.0
  %2108 = vmatpush1.msra.mxu0 %v2085
  %2109 = vmatprep.subr.mxu0 0.0
  %2110 = vmatpush1.msra.mxu0 %v2086
  %2111 = vmatprep.subr.mxu0 0.0
  %2112 = vmatpush1.msra.mxu0 %v2087
  %2113 = vmatprep.subr.mxu0 0.0
  %2114 = vmatpush1.msra.mxu0 %v2088
  %2115 = vmatprep.subr.mxu0 0.0
  %2116 = vmatpush1.msra.mxu0 %v2089
  %2117 = vmatprep.subr.mxu0 0.0
  %2118 = vmatpush1.msra.mxu0 0.0
  %2119 = vmatprep.subr.mxu0 0.0
  %2120 = vmatpush1.msra.mxu0 0.0
  %2121 = vmatprep.subr.mxu0 0.0
  %2122 = vmatpush1.msra.mxu0 0.0
  %2123 = vmatprep.subr.mxu0 0.0
  %2124 = vmatpush1.msra.mxu0 0.0
  %2125 = vmatprep.subr.mxu0 0.0
  %2126 = vmatpush1.msra.mxu0 0.0
  %2127 = vmatprep.subr.mxu0 0.0
  %2128 = vmatpush1.msra.mxu0 0.0
  %2129 = vmatprep.subr.mxu0 0.0
  %2130 = vmatpush1.msra.mxu0 0.0
  %2131 = vmatprep.subr.mxu0 0.0
  %2132 = vmatpush1.msra.mxu0 0.0
  %2133 = vmatprep.subr.mxu0 0.0
  %2134 = vmatpush1.msra.mxu0 0.0
  %2135 = vmatprep.subr.mxu0 0.0
  %2136 = vmatpush1.msra.mxu0 0.0
  %2137 = vmatprep.subr.mxu0 0.0
  %2138 = vmatpush1.msra.mxu0 0.0
  %2139 = vmatprep.subr.mxu0 0.0
  %2140 = vmatpush1.msra.mxu0 0.0
  %2141 = vmatprep.subr.mxu0 0.0
  %2142 = vmatpush1.msra.mxu0 0.0
  %2143 = vmatprep.subr.mxu0 0.0
  %2144 = vmatpush1.msra.mxu0 0.0
  %2145 = vmatprep.subr.mxu0 0.0
  %2146 = vmatpush1.msra.mxu0 0.0
  %2147 = vmatprep.subr.mxu0 0.0
  %2148 = vmatpush1.msra.mxu0 0.0
  %2149 = vmatprep.subr.mxu0 0.0
  %2150 = vmatpush1.msra.mxu0 0.0
  %2151 = vmatprep.subr.mxu0 0.0
  %2152 = vmatpush1.msra.mxu0 0.0
  %2153 = vmatprep.subr.mxu0 0.0
  %2154 = vmatpush1.msra.mxu0 0.0
  %2155 = vmatprep.subr.mxu0 0.0
  %2156 = vmatpush1.msra.mxu0 0.0
  %2157 = vmatprep.subr.mxu0 0.0
  %2158 = vmatpush1.msra.mxu0 0.0
  %2159 = vmatprep.subr.mxu0 0.0
  %2160 = vmatpush1.msra.mxu0 0.0
  %2161 = vmatprep.subr.mxu0 0.0
  %2162 = vmatpush1.msra.mxu0 0.0
  %2163 = vmatprep.subr.mxu0 0.0
  %2164 = vmatpush1.msra.mxu0 0.0
  %2165 = vmatprep.mubr.f32.mxu0 0.0
  %2166 = vmatmul.mubr.f32.gmra.mrb[0].mxu0 %v2099
  %v2167 = vpop.f32.mrb[0].mxu0
  %v2168 = vadd.f32 %v2095, %v2167
  %v2169 = vpop.f32.mrb[0].mxu0
  %2170 = vdwg.mxu0
  %v2171 = vadd.f32 %v2168, %v20
  %2172 = vst [vmem:[%s5] sm:$0xff] %v2171
  // Predicated region
  $region22: #{residual_linear_attention.1} parent=0 // pred_check
    _
  $region23: #{residual_linear_attention.1} parent=0 // pred_check_branch
    %2174 = sbr.rel (0) target = $region25
  $region24: #{residual_linear_attention.1} parent=0 // pred_region
    _
  $region25: #{residual_linear_attention.1} parent=0 // pred_fallthru
    _
  // Predicated region
  $region26: #{residual_linear_attention.1} parent=0 // pred_check
    _
  $region27: #{residual_linear_attention.1} parent=0 // pred_check_branch
    %2176 = sbr.rel (0) target = $region29
  $region28: #{residual_linear_attention.1} parent=0 // pred_region
    _
  $region29: #{residual_linear_attention.1} parent=0 // pred_fallthru
    _

</llo_original>
